<compile_context>
chip_gen: v7x
topology: tpu7x:2x2x1
jax: 0.10.0
libtpu: 0.0.40
codegen_flags: <defaults>
</compile_context>

<pallas_src>
import functools

import jax
import jax.numpy as jnp
from jax.experimental import pallas as pl
from jax.experimental.pallas import tpu as pltpu


def _round_up(v, m):
    return (v + m - 1) // m * m


def change_dim_kernel(x_ref, m_ref, w_ref, b_ref, out_ref, sum_ref, cnt_ref,
                      *, seq_len, seq_tile, needs_tail_mask):
    # x_ref:   [TS, E]   sequence tile of token embeddings (batch dim squeezed)
    # m_ref:   [1, TS]   attention-mask tile for this batch row
    # w_ref:   [Dp, E]   mapping weight (torch layout, Dp = D padded to 128)
    # b_ref:   [1, Dp]   mapping bias (padded)
    # out_ref: [1, Dp]
    # sum_ref: VMEM [1, E] f32 accumulator, cnt_ref: VMEM [1, 1] f32 accumulator
    s = pl.program_id(1)

    @pl.when(s == 0)
    def _():
        sum_ref[...] = jnp.zeros_like(sum_ref)
        cnt_ref[...] = jnp.zeros_like(cnt_ref)

    m = m_ref[...]                                   # [1, TS]
    x = x_ref[...]                                   # [TS, E]

    if needs_tail_mask:
        # Last sequence tile may run past S: zero both mask lanes and x rows so
        # no out-of-bounds garbage (even NaN) can reach the contraction.
        base = s * seq_tile
        col = base + jax.lax.broadcasted_iota(jnp.int32, (1, seq_tile), 1)
        m = jnp.where(col < seq_len, m, jnp.zeros_like(m))
        row = base + jax.lax.broadcasted_iota(jnp.int32, (seq_tile, 1), 0)
        x = jnp.where(row < seq_len, x, jnp.zeros_like(x))

    # --- synthetic embedding model: masked mean pooling over sequence ---
    # TODO(synk): the real `embedding_model` is an arbitrary nn.Module; only its
    # output contract (a [B, E] embedding) is reproduced here.
    # Masked sum as a single MXU contraction: [1,TS] @ [TS,E] -> [1,E].
    sum_ref[...] += jnp.dot(
        m, x,
        preferred_element_type=jnp.float32,
        precision=jax.lax.Precision.HIGHEST)
    cnt_ref[...] += jnp.sum(m.astype(jnp.float32), axis=1, keepdims=True)

    @pl.when(s == pl.num_programs(1) - 1)
    def _():
        inv = pl.reciprocal(jnp.maximum(cnt_ref[...], 1.0), approx=False)
        pooled = sum_ref[...] * inv                  # [1, E]
        # --- mapping: Linear(E -> D), weight kept [Dp, E] (transposed RHS) ---
        out = jax.lax.dot_general(
            pooled, w_ref[...],
            dimension_numbers=(((1,), (1,)), ((), ())),
            preferred_element_type=jnp.float32,
            precision=jax.lax.Precision.HIGHEST)     # [1, Dp]
        out_ref[...] = (out + b_ref[...]).astype(out_ref.dtype)


def change_dim_wrapper(x, attention_mask, weight, bias):
    """x: [B,S,E], attention_mask: [B,S], weight: [D,E] (torch Linear), bias: [D]."""
    B, S, E = x.shape
    D = weight.shape[0]
    Dp = _round_up(D, 128)              # lane-dense output / no masked stores

    # Pad mapping params once per call (hoist outside the hot path in prod).
    w_p = jnp.pad(weight, ((0, Dp - D), (0, 0)))              # [Dp, E]
    b_p = jnp.pad(bias, (0, Dp - D)).reshape(1, Dp)           # [1, Dp]
    # Mask presented as [B, 1, S] so each tile is a ready-to-use matmul LHS row.
    m3 = attention_mask.astype(x.dtype).reshape(B, 1, S)

    # Sequence tiling: short sequences run as one full-extent tile; long ones
    # use 512-token tiles (multiple of 128 lanes / 8 sublanes) + tail masking.
    TS = S if S <= 512 else 512
    n_s = pl.cdiv(S, TS)
    needs_tail_mask = (S % TS) != 0

    kernel = functools.partial(
        change_dim_kernel, seq_len=S, seq_tile=TS,
        needs_tail_mask=needs_tail_mask)

    itemsize = jnp.dtype(x.dtype).itemsize
    cost = pl.CostEstimate(
        flops=2 * B * S * E + 2 * B * E * Dp,
        transcendentals=0,
        bytes_accessed=int(B * S * E * itemsize + B * S * itemsize
                           + Dp * E * 4 + Dp * 4 + B * Dp * itemsize),
    )

    out = pl.pallas_call(
        kernel,
        out_shape=jax.ShapeDtypeStruct((B, 1, Dp), x.dtype),
        grid=(B, n_s),
        in_specs=[
            pl.BlockSpec((None, TS, E), lambda b, s: (b, s, 0)),   # x tile
            pl.BlockSpec((None, 1, TS), lambda b, s: (b, 0, s)),   # mask tile
            pl.BlockSpec((Dp, E), lambda b, s: (0, 0)),            # weight (resident)
            pl.BlockSpec((1, Dp), lambda b, s: (0, 0)),            # bias (resident)
        ],
        out_specs=pl.BlockSpec((None, 1, Dp), lambda b, s: (b, 0, 0)),
        scratch_shapes=[
            pltpu.VMEM((1, E), jnp.float32),   # running masked sum
            pltpu.VMEM((1, 1), jnp.float32),   # running token count
        ],
        compiler_params=pltpu.CompilerParams(
            dimension_semantics=("parallel", "arbitrary")),
        cost_estimate=cost,
    )(x, m3, w_p, b_p)

    return out.reshape(B, Dp)[:, :D]


def reference(x, attention_mask, weight, bias):
    m = attention_mask[:, :, None]
    pooled = (x * m).sum(axis=1) / jnp.maximum(
        attention_mask.sum(axis=1, keepdims=True), 1.0)
    return pooled @ weight.T + bias


if __name__ == "__main__":
    B, S, E, D = 2, 8, 32, 16  # batch, seq, embedding_dim, output_dim

    key = jax.random.PRNGKey(0)
    kx, kw, kb = jax.random.split(key, 3)

    x = jax.random.normal(kx, (B, S, E), dtype=jnp.float32)
    # deterministic attention mask: first 6 tokens valid for sample 0, 4 for sample 1
    lengths = jnp.array([6, 4], dtype=jnp.int32)
    attention_mask = (jnp.arange(S)[None, :] < lengths[:, None]).astype(jnp.float32)

    # Linear(embedding_dim, output_dim): weight [D, E], bias [D]
    bound = 1.0 / (E ** 0.5)
    weight = jax.random.uniform(kw, (D, E), minval=-bound, maxval=bound, dtype=jnp.float32)
    bias = jax.random.uniform(kb, (D,), minval=-bound, maxval=bound, dtype=jnp.float32)

    out = change_dim_wrapper(x, attention_mask, weight, bias)
    out = jax.block_until_ready(out)

    ref = reference(x, attention_mask, weight, bias)
    assert out.shape == (B, D)
    assert jnp.allclose(out, ref, atol=1e-4, rtol=1e-4), float(jnp.max(jnp.abs(out - ref)))

    print("KERNEL_OK")
</pallas_src>

<mosaic_0001>
module attributes {stable_mosaic.version = 11 : i64} {
  func.func @change_dim_kernel(%arg0: i32, %arg1: i32, %arg2: memref<1x8x32xf32, #tpu.memory_space<vmem>>, %arg3: memref<1x1x8xf32, #tpu.memory_space<vmem>>, %arg4: memref<128x32xf32, #tpu.memory_space<vmem>>, %arg5: memref<1x128xf32, #tpu.memory_space<vmem>>, %arg6: memref<1x1x128xf32, #tpu.memory_space<vmem>>, %arg7: memref<1x32xf32, #tpu.memory_space<vmem>>, %arg8: memref<1x1xf32, #tpu.memory_space<vmem>>) attributes {dimension_semantics = [#tpu.dimension_semantics<parallel>, #tpu.dimension_semantics<arbitrary>], iteration_bounds = array<i64: 2, 1>, scalar_prefetch = 0 : i64, scratch_operands = 2 : i64, tpu.core_type = #tpu.core_type<tc>, window_params = [{transform_indices = @transform_0, window_bounds = array<i64: 1, 8, 32>}, {transform_indices = @transform_1, window_bounds = array<i64: 1, 1, 8>}, {pipeline_mode = #tpu.pipeline_mode<synchronous>, transform_indices = @transform_2, window_bounds = array<i64: 128, 32>}, {pipeline_mode = #tpu.pipeline_mode<synchronous>, transform_indices = @transform_3, window_bounds = array<i64: 1, 128>}, {transform_indices = @transform_4, window_bounds = array<i64: 1, 1, 128>}]} {
    %c0_i32 = arith.constant 0 : i32
    %0 = arith.cmpi eq, %arg1, %c0_i32 : i32
    %1 = arith.extui %0 : i1 to i32
    %c0_i32_0 = arith.constant 0 : i32
    %2 = arith.cmpi ne, %1, %c0_i32_0 : i32
    scf.if %2 {
      %cst_17 = arith.constant 0.000000e+00 : f32
      %19 = vector.broadcast %cst_17 : f32 to vector<1x32xf32>
      %c0_18 = arith.constant 0 : index
      %c0_19 = arith.constant 0 : index
      %20 = vector.load %arg7[%c0_18, %c0_19] : memref<1x32xf32, #tpu.memory_space<vmem>>, vector<1x32xf32>
      tpu.vector_store %arg7[%c0_18, %c0_19], %19 {strides = array<i32>} : memref<1x32xf32, #tpu.memory_space<vmem>>, vector<1x32xf32>,
      %cst_20 = arith.constant 0.000000e+00 : f32
      %21 = vector.broadcast %cst_20 : f32 to vector<1x1xf32>
      %c0_21 = arith.constant 0 : index
      %c0_22 = arith.constant 0 : index
      %22 = vector.load %arg8[%c0_21, %c0_22] : memref<1x1xf32, #tpu.memory_space<vmem>>, vector<1x1xf32>
      tpu.vector_store %arg8[%c0_21, %c0_22], %21 {strides = array<i32>} : memref<1x1xf32, #tpu.memory_space<vmem>>, vector<1x1xf32>,
    } else {
    }
    %c0 = arith.constant 0 : index
    %c0_1 = arith.constant 0 : index
    %c0_2 = arith.constant 0 : index
    %3 = vector.load %arg3[%c0, %c0_1, %c0_2] : memref<1x1x8xf32, #tpu.memory_space<vmem>>, vector<1x1x8xf32>
    %4 = vector.shape_cast %3 : vector<1x1x8xf32> to vector<1x8xf32>
    %c0_3 = arith.constant 0 : index
    %c0_4 = arith.constant 0 : index
    %c0_5 = arith.constant 0 : index
    %5 = vector.load %arg2[%c0_3, %c0_4, %c0_5] : memref<1x8x32xf32, #tpu.memory_space<vmem>>, vector<1x8x32xf32>
    %6 = vector.shape_cast %5 : vector<1x8x32xf32> to vector<8x32xf32>
    %c0_6 = arith.constant 0 : index
    %c0_7 = arith.constant 0 : index
    %7 = vector.load %arg7[%c0_6, %c0_7] : memref<1x32xf32, #tpu.memory_space<vmem>>, vector<1x32xf32>
    %cst = arith.constant dense<0.000000e+00> : vector<1x32xf32>
    %8 = tpu.matmul %4, %6, %cst {dimension_numbers = #tpu.dot_dimension_numbers<[1], [0], [0], [1], [0, 0, 1, 1], [], []>, precision = #tpu.contract_precision<fp32>} : vector<1x8xf32>, vector<8x32xf32>, vector<1x32xf32> -> vector<1x32xf32>
    %9 = arith.addf %7, %8 : vector<1x32xf32>
    %c0_8 = arith.constant 0 : index
    %c0_9 = arith.constant 0 : index
    %10 = vector.load %arg7[%c0_8, %c0_9] : memref<1x32xf32, #tpu.memory_space<vmem>>, vector<1x32xf32>
    tpu.vector_store %arg7[%c0_8, %c0_9], %9 {strides = array<i32>} : memref<1x32xf32, #tpu.memory_space<vmem>>, vector<1x32xf32>,
    %c0_10 = arith.constant 0 : index
    %c0_11 = arith.constant 0 : index
    %11 = vector.load %arg8[%c0_10, %c0_11] : memref<1x1xf32, #tpu.memory_space<vmem>>, vector<1x1xf32>
    %cst_12 = arith.constant dense<0.000000e+00> : vector<1xf32>
    %12 = vector.multi_reduction <add>, %4, %cst_12 [1] : vector<1x8xf32> to vector<1xf32>
    %13 = vector.shape_cast %12 : vector<1xf32> to vector<1x1xf32>
    %14 = arith.addf %11, %13 : vector<1x1xf32>
    %c0_13 = arith.constant 0 : index
    %c0_14 = arith.constant 0 : index
    %15 = vector.load %arg8[%c0_13, %c0_14] : memref<1x1xf32, #tpu.memory_space<vmem>>, vector<1x1xf32>
    tpu.vector_store %arg8[%c0_13, %c0_14], %14 {strides = array<i32>} : memref<1x1xf32, #tpu.memory_space<vmem>>, vector<1x1xf32>,
    %c0_i32_15 = arith.constant 0 : i32
    %16 = arith.cmpi eq, %arg1, %c0_i32_15 : i32
    %17 = arith.extui %16 : i1 to i32
    %c0_i32_16 = arith.constant 0 : i32
    %18 = arith.cmpi ne, %17, %c0_i32_16 : i32
    scf.if %18 {
      %c0_17 = arith.constant 0 : index
      %c0_18 = arith.constant 0 : index
      %19 = vector.load %arg8[%c0_17, %c0_18] : memref<1x1xf32, #tpu.memory_space<vmem>>, vector<1x1xf32>
      %cst_19 = arith.constant 1.000000e+00 : f32
      %20 = vector.broadcast %cst_19 : f32 to vector<1x1xf32>
      %21 = arith.maximumf %19, %20 : vector<1x1xf32>
      %22 = tpu.reciprocal %21 : vector<1x1xf32> -> vector<1x1xf32>
      %c0_20 = arith.constant 0 : index
      %c0_21 = arith.constant 0 : index
      %23 = vector.load %arg7[%c0_20, %c0_21] : memref<1x32xf32, #tpu.memory_space<vmem>>, vector<1x32xf32>
      %24 = vector.broadcast %22 : vector<1x1xf32> to vector<1x32xf32>
      %25 = arith.mulf %23, %24 : vector<1x32xf32>
      %c0_22 = arith.constant 0 : index
      %c0_23 = arith.constant 0 : index
      %26 = vector.load %arg4[%c0_22, %c0_23] : memref<128x32xf32, #tpu.memory_space<vmem>>, vector<128x32xf32>
      %cst_24 = arith.constant dense<0.000000e+00> : vector<1x128xf32>
      %27 = tpu.matmul %25, %26, %cst_24 {dimension_numbers = #tpu.dot_dimension_numbers<[1], [1], [0], [0], [0, 0, 1, 0], [], []>, precision = #tpu.contract_precision<fp32>} : vector<1x32xf32>, vector<128x32xf32>, vector<1x128xf32> -> vector<1x128xf32>
      %c0_25 = arith.constant 0 : index
      %c0_26 = arith.constant 0 : index
      %28 = vector.load %arg5[%c0_25, %c0_26] : memref<1x128xf32, #tpu.memory_space<vmem>>, vector<1x128xf32>
      %29 = arith.addf %27, %28 : vector<1x128xf32>
      %c0_27 = arith.constant 0 : index
      %c0_28 = arith.constant 0 : index
      %c0_29 = arith.constant 0 : index
      %30 = vector.load %arg6[%c0_27, %c0_28, %c0_29] : memref<1x1x128xf32, #tpu.memory_space<vmem>>, vector<1x1x128xf32>
      %31 = vector.shape_cast %30 : vector<1x1x128xf32> to vector<1x128xf32>
      %32 = vector.shape_cast %29 : vector<1x128xf32> to vector<1x1x128xf32>
      tpu.vector_store %arg6[%c0_27, %c0_28, %c0_29], %32 {strides = array<i32>} : memref<1x1x128xf32, #tpu.memory_space<vmem>>, vector<1x1x128xf32>,
    } else {
    }
    return
  }
  func.func @transform_0(%arg0: i32, %arg1: i32) -> (i32, i32, i32) {
    %c0_i32 = arith.constant 0 : i32
    %c0_i32_0 = arith.constant 0 : i32
    return %arg0, %arg1, %c0_i32 : i32, i32, i32
  }
  func.func @transform_1(%arg0: i32, %arg1: i32) -> (i32, i32, i32) {
    %c0_i32 = arith.constant 0 : i32
    %c0_i32_0 = arith.constant 0 : i32
    return %arg0, %c0_i32, %arg1 : i32, i32, i32
  }
  func.func @transform_2(%arg0: i32, %arg1: i32) -> (i32, i32) {
    %c0_i32 = arith.constant 0 : i32
    %c0_i32_0 = arith.constant 0 : i32
    %c0_i32_1 = arith.constant 0 : i32
    return %c0_i32, %c0_i32_0 : i32, i32
  }
  func.func @transform_3(%arg0: i32, %arg1: i32) -> (i32, i32) {
    %c0_i32 = arith.constant 0 : i32
    %c0_i32_0 = arith.constant 0 : i32
    %c0_i32_1 = arith.constant 0 : i32
    return %c0_i32, %c0_i32_0 : i32, i32
  }
  func.func @transform_4(%arg0: i32, %arg1: i32) -> (i32, i32, i32) {
    %c0_i32 = arith.constant 0 : i32
    %c0_i32_0 = arith.constant 0 : i32
    %c0_i32_1 = arith.constant 0 : i32
    return %arg0, %c0_i32, %c0_i32_0 : i32, i32, i32
  }
}

</mosaic_0001>

<llo_original>
// kernel: tpu_custom_call.1
$region0: #{tpu_custom_call.1}
  #allocation0 [shape = 'u32[]', space=smem, size = 0x4, offset = 0x4, fixed_abs, tag = 'smem constant byte address 0x4 - core index']
  #allocation1 [shape = 'u32[144,128]{1,0:T(1,128)}', space=vmem, size = 0x12000, scoped, tag = 'internal scratch']
  #allocation2 [shape = 'f32[1,32]{1,0:T(1,128)}', space=vmem, size = 0x200, scoped, tag = 'scratch operand']
  #allocation3 [shape = 'f32[1,1]{1,0:T(1,128)}', space=vmem, size = 0x200, scoped, tag = 'scratch operand']
  %s0 = inlined_call_operand.vmem [shape: f32[2,8,32], index: 0, kind: input, shape index: {}]
  %s1 = inlined_call_operand.vmem [shape: f32[2,1,8], index: 1, kind: input, shape index: {}]
  %s2 = inlined_call_operand.vmem [shape: f32[128,32], index: 2, kind: input, shape index: {}]
  %s3 = inlined_call_operand.vmem [shape: f32[1,128], index: 3, kind: input, shape index: {}]
  %s4 = inlined_call_operand.hbm [shape: f32[2,1,128], index: 4, kind: output, shape index: {}]
  %s5 = sld [smem:[#allocation0]]
  $region57: #{tpu_custom_call.1} parent=0
    _
  %s7 = ssub.s32 1, %s5
  %s8 = scalar_select 0, %s7, %s5
  $region1: #{tpu_custom_call.1} parent=0
    #allocation4 [shape = 'u8[1024]{0}', space=vmem, size = 0x400, scoped, tag = 'output window, operand 0']
    #allocation5 [shape = 's32[2]{0}', space=sflag, size = 0x8, scoped, tag = 'scoped memory for tpu_custom_call.1']
    %9 = vsyncpa [#allocation5], 0
    %s10 = scalar_lea.sflag [#allocation5], 1
    %11 = vsyncpa %s10, 0
    loop: start=0, step=1, limit=4
    $region2: #{tpu_custom_call.1} parent=1 // loop_pre_header
      _
    $region3: #{tpu_custom_call.1} parent=1 // loop_header
      %s13 = sphi 0, %s17
      %p14 = scmp.ge.s32.totalorder %s13, 4
      %s20 = sphi 0, %s32
      %s21 = sphi 0, %s28
      %s22 = sphi 0, %s20
      %s23 = sphi 0, %s21
      %s24 = sphi 0, %s22
      %s25 = sphi 0, %s23
      %s37 = sphi 0, %s39
      %s40 = sphi 0, %s37
      %s41 = sphi 0, %s40
      %s57 = sphi 0, %s41
      %s65 = sphi 0, %s67
      %s68 = sphi 0, %s65
      %s69 = sphi 0, %s68
      %s85 = sphi 0, %s69
      %s89 = sphi 0, %s89
      %s91 = sphi 0, %s89
      %s92 = sphi 0, %s91
      %s106 = sphi 0, %s92
      %s110 = sphi 0, %s110
      %s112 = sphi 0, %s110
      %s113 = sphi 0, %s112
      %s127 = sphi 0, %s113
      %s133 = sphi 0, %s135
      %s136 = sphi 0, %s133
      %s137 = sphi 0, %s136
      %s153 = sphi 0, %s137
    $region4: #{tpu_custom_call.1} parent=1 // loop_header_branch
      %16 = sbr.rel (%p14) target = $region8
    $region5: #{tpu_custom_call.1} parent=1 // loop_body
      %s18 = ssub.s32 %s13, 1
      %s19 = ssub.s32 %s13, 2
      %s26 = sadd.s32 1, %s21
      %p27 = scmp.ge.s32.totalorder %s26, 1
      %s28 = scalar_select %p27, 0, %s26
      %s29 = sadd.s32 1, %s20
      %s30 = scalar_select %p27, %s29, %s20
      %p31 = scmp.ge.s32.totalorder %s30, 2
      %s32 = scalar_select %p31, 0, %s30
      %s33 = ssub.s32 %s20, %s32
      %s34 = ssub.s32 %s21, %s28
      %s35 = sor.u32 %s33, %s34
      %p36 = scmp.eq.s32.totalorder %s35, 0
      %s38 = sadd.s32 %s37, 1
      %s39 = scalar_select %p36, %s37, %s38
      %p42 = pneg %p36
      %p43 = scmp.eq.s32.totalorder %s13, 1
      %p44 = por %p42, %p43
      %p45 = scmp.ne.s32.totalorder %s37, %s40
      %p46 = scmp.eq.s32.totalorder %s13, 0
      %p47 = por %p45, %p46
      %p48 = scmp.ne.s32.totalorder %s37, %s40
      %p49 = scmp.eq.s32.totalorder %s18, 1
      %p50 = por %p48, %p49
      %p51 = scmp.ne.s32.totalorder %s40, %s41
      %p52 = scmp.eq.s32.totalorder %s18, 0
      %p53 = por %p51, %p52
      %p54 = scmp.ne.s32.totalorder %s40, %s41
      %p55 = scmp.eq.s32.totalorder %s19, 1
      %p56 = por %p54, %p55
      %p58 = scmp.ne.s32.totalorder %s41, %s57
      %p59 = scmp.eq.s32.totalorder %s19, 0
      %p60 = por %p58, %p59
      %s61 = ssub.s32 %s20, %s32
      %s62 = ssub.s32 %s21, %s28
      %s63 = sor.u32 %s61, %s62
      %p64 = scmp.eq.s32.totalorder %s63, 0
      %s66 = sadd.s32 %s65, 1
      %s67 = scalar_select %p64, %s65, %s66
      %p70 = pneg %p64
      %p71 = scmp.eq.s32.totalorder %s13, 1
      %p72 = por %p70, %p71
      %p73 = scmp.ne.s32.totalorder %s65, %s68
      %p74 = scmp.eq.s32.totalorder %s13, 0
      %p75 = por %p73, %p74
      %p76 = scmp.ne.s32.totalorder %s65, %s68
      %p77 = scmp.eq.s32.totalorder %s18, 1
      %p78 = por %p76, %p77
      %p79 = scmp.ne.s32.totalorder %s68, %s69
      %p80 = scmp.eq.s32.totalorder %s18, 0
      %p81 = por %p79, %p80
      %p82 = scmp.ne.s32.totalorder %s68, %s69
      %p83 = scmp.eq.s32.totalorder %s19, 1
      %p84 = por %p82, %p83
      %p86 = scmp.ne.s32.totalorder %s69, %s85
      %p87 = scmp.eq.s32.totalorder %s19, 0
      %p88 = por %p86, %p87
      %s90 = sadd.s32 %s89, 1
      %p93 = scmp.eq.s32.totalorder %s13, 1
      %p94 = scmp.ne.s32.totalorder %s89, %s91
      %p95 = scmp.eq.s32.totalorder %s13, 0
      %p96 = por %p94, %p95
      %p97 = scmp.ne.s32.totalorder %s89, %s91
      %p98 = scmp.eq.s32.totalorder %s18, 1
      %p99 = por %p97, %p98
      %p100 = scmp.ne.s32.totalorder %s91, %s92
      %p101 = scmp.eq.s32.totalorder %s18, 0
      %p102 = por %p100, %p101
      %p103 = scmp.ne.s32.totalorder %s91, %s92
      %p104 = scmp.eq.s32.totalorder %s19, 1
      %p105 = por %p103, %p104
      %p107 = scmp.ne.s32.totalorder %s92, %s106
      %p108 = scmp.eq.s32.totalorder %s19, 0
      %p109 = por %p107, %p108
      %s111 = sadd.s32 %s110, 1
      %p114 = scmp.eq.s32.totalorder %s13, 1
      %p115 = scmp.ne.s32.totalorder %s110, %s112
      %p116 = scmp.eq.s32.totalorder %s13, 0
      %p117 = por %p115, %p116
      %p118 = scmp.ne.s32.totalorder %s110, %s112
      %p119 = scmp.eq.s32.totalorder %s18, 1
      %p120 = por %p118, %p119
      %p121 = scmp.ne.s32.totalorder %s112, %s113
      %p122 = scmp.eq.s32.totalorder %s18, 0
      %p123 = por %p121, %p122
      %p124 = scmp.ne.s32.totalorder %s112, %s113
      %p125 = scmp.eq.s32.totalorder %s19, 1
      %p126 = por %p124, %p125
      %p128 = scmp.ne.s32.totalorder %s113, %s127
      %p129 = scmp.eq.s32.totalorder %s19, 0
      %p130 = por %p128, %p129
      %s131 = ssub.s32 %s20, %s32
      %p132 = scmp.eq.s32.totalorder %s131, 0
      %s134 = sadd.s32 %s133, 1
      %s135 = scalar_select %p132, %s133, %s134
      %p138 = pneg %p132
      %p139 = scmp.eq.s32.totalorder %s13, 1
      %p140 = por %p138, %p139
      %p141 = scmp.ne.s32.totalorder %s133, %s136
      %p142 = scmp.eq.s32.totalorder %s13, 0
      %p143 = por %p141, %p142
      %p144 = scmp.ne.s32.totalorder %s133, %s136
      %p145 = scmp.eq.s32.totalorder %s18, 1
      %p146 = por %p144, %p145
      %p147 = scmp.ne.s32.totalorder %s136, %s137
      %p148 = scmp.eq.s32.totalorder %s18, 0
      %p149 = por %p147, %p148
      %p150 = scmp.ne.s32.totalorder %s136, %s137
      %p151 = scmp.eq.s32.totalorder %s19, 1
      %p152 = por %p150, %p151
      %p154 = scmp.ne.s32.totalorder %s137, %s153
      %p155 = scmp.eq.s32.totalorder %s19, 0
      %p156 = por %p154, %p155
      %p157 = scmp.le.s32.totalorder 1, %s13
      %p158 = scmp.lt.s32.totalorder %s13, 3
      %p159 = pnand %p157, %p158
      %p160 = pneg %p159
      // Predicated region
      $region9: #{tpu_custom_call.1} parent=5 // pred_check
        _
      $region10: #{tpu_custom_call.1} parent=5 // pred_check_branch
        %162 = sbr.rel (%p159) target = $region12
      $region11: #{tpu_custom_call.1} parent=5 // pred_region
        %s163 = ssub.s32 %s13, 1
        // Predicated region
        $region13: #{tpu_custom_call.1} parent=11 // pred_check
          %p164 = pneg %p102
        $region14: #{tpu_custom_call.1} parent=11 // pred_check_branch
          %166 = sbr.rel (%p164) target = $region16
        $region15: #{tpu_custom_call.1} parent=11 // pred_region
          _
        $region16: #{tpu_custom_call.1} parent=11 // pred_fallthru
          _
        // Predicated region
        $region17: #{tpu_custom_call.1} parent=11 // pred_check
          %p167 = pneg %p123
        $region18: #{tpu_custom_call.1} parent=11 // pred_check_branch
          %169 = sbr.rel (%p167) target = $region20
        $region19: #{tpu_custom_call.1} parent=11 // pred_region
          _
        $region20: #{tpu_custom_call.1} parent=11 // pred_fallthru
          _
      $region12: #{tpu_custom_call.1} parent=5 // pred_fallthru
        _
      %p170 = scmp.lt.s32.totalorder %s13, 2
      // Predicated region
      $region21: #{tpu_custom_call.1} parent=5 // pred_check
        %p171 = pneg %p170
      $region22: #{tpu_custom_call.1} parent=5 // pred_check_branch
        %173 = sbr.rel (%p171) target = $region24
      $region23: #{tpu_custom_call.1} parent=5 // pred_region
        // Predicated region
        $region25: #{tpu_custom_call.1} parent=23 // pred_check
          %p174 = pneg %p47
        $region26: #{tpu_custom_call.1} parent=23 // pred_check_branch
          %176 = sbr.rel (%p174) target = $region28
        $region27: #{tpu_custom_call.1} parent=23 // pred_region
          %p177 = scmp.lt.s32.totalorder %s20, 1
          %s178 = scalar_select %p177, %s20, 1
          %p179 = scmp.lt.s32.totalorder %s21, 0
          %s180 = scalar_select %p179, %s21, 0
          %s181 = sadd.s32 %s180, %s178
          %s182 = smul.addr %s181, 8
          %s183 = scalar_lea.vmem %s0, %s182
        $region28: #{tpu_custom_call.1} parent=23 // pred_fallthru
          _
        // Predicated region
        $region29: #{tpu_custom_call.1} parent=23 // pred_check
          %p184 = pneg %p75
        $region30: #{tpu_custom_call.1} parent=23 // pred_check_branch
          %186 = sbr.rel (%p184) target = $region32
        $region31: #{tpu_custom_call.1} parent=23 // pred_region
          %p187 = scmp.lt.s32.totalorder %s20, 1
          %s188 = scalar_select %p187, %s20, 1
          %p189 = scmp.lt.s32.totalorder %s21, 0
          %s190 = scalar_select %p189, %s21, 0
          %s191 = sadd.s32 %s190, %s188
          %s192 = scalar_lea.vmem %s1, %s191
        $region32: #{tpu_custom_call.1} parent=23 // pred_fallthru
          _
      $region24: #{tpu_custom_call.1} parent=5 // pred_fallthru
        _
      %p193 = scmp.le.s32.totalorder 1, %s13
      %p194 = scmp.lt.s32.totalorder %s13, 3
      %p195 = pnand %p193, %p194
      %p196 = pneg %p195
      // Predicated region
      $region33: #{tpu_custom_call.1} parent=5 // pred_check
        _
      $region34: #{tpu_custom_call.1} parent=5 // pred_check_branch
        %198 = sbr.rel (%p195) target = $region36
      $region35: #{tpu_custom_call.1} parent=5 // pred_region
        %s199 = ssub.s32 %s13, 1
        %p200 = scmp.lt.s32.totalorder %s22, 1
        %s201 = scalar_select %p200, %s22, 1
        %p202 = scmp.lt.s32.totalorder %s23, 0
        %s203 = scalar_select %p202, %s23, 0
        %s204 = sadd.s32 %s203, %s201
        %s205 = smul.addr %s204, 8
        %s206 = scalar_lea.vmem %s0, %s205
        %p207 = pneg %p53
        %p208 = pneg %p50
        %p209 = scmp.lt.s32.totalorder %s22, 1
        %s210 = scalar_select %p209, %s22, 1
        %p211 = scmp.lt.s32.totalorder %s23, 0
        %s212 = scalar_select %p211, %s23, 0
        %s213 = sadd.s32 %s212, %s210
        %s214 = scalar_lea.vmem %s1, %s213
        %p215 = pneg %p81
        %p216 = pneg %p78
        %p217 = pneg %p102
        %p218 = pneg %p99
        %p219 = pneg %p123
        %p220 = pneg %p120
        %p221 = pneg %p149
        %p222 = pneg %p146
        %s223 = sand.u32 %s136, 1
        %s224 = scalar_lea.sflag [#allocation5], %s223
        %s225 = sand.u32 %s136, 1
        %s226 = scalar_lea.vmem [#allocation4], %s225
        %p227 = scmp.lt.s32.totalorder %s22, 1
        %s228 = scalar_select %p227, %s22, 1
        %p229 = scmp.lt.s32.totalorder %s23, 0
        %s230 = scalar_select %p229, %s23, 0
        %s231 = sadd.s32 %s230, %s228
        %s232 = smul.addr %s231, 8
        %s233 = scalar_lea.vmem %s0, %s232
        %p234 = scmp.lt.s32.totalorder %s22, 1
        %s235 = scalar_select %p234, %s22, 1
        %p236 = scmp.lt.s32.totalorder %s23, 0
        %s237 = scalar_select %p236, %s23, 0
        %s238 = sadd.s32 %s237, %s235
        %s239 = scalar_lea.vmem %s1, %s238
        %p240 = scmp.eq.s32.totalorder %s23, 0
        // Predicated region
        $region37: #{tpu_custom_call.1} parent=35 // pred_check
          %p241 = pneg %p240
        $region38: #{tpu_custom_call.1} parent=35 // pred_check_branch
          %243 = sbr.rel (%p241) target = $region40
        $region39: #{tpu_custom_call.1} parent=35 // pred_region
          %vm244 = vcmask 253952
          %245 = vst.msk [vmem:[#allocation2] sm:$0x1] %vm244, 0.0
          %vm246 = vcmask 0
          %247 = vst.msk [vmem:[#allocation3] sm:$0x1] %vm246, 0.0
        $region40: #{tpu_custom_call.1} parent=35 // pred_fallthru
          _
        %v248 = vld [vmem:[%s239] sm:$0x1]
        %v249 = vld [vmem:[%s233] sm:$0xff]
        %v250 = vld [vmem:[#allocation2] sm:$0x1]
        %vm251 = vcmask 64512
        %v253 = vsel %vm251, %v248, 0
        %255 = vmatprep.subr.mxu0 0.0
        %v256 = vand.u32 %v249, 4294901760
        %257 = vmatpush1.msra.mxu0 %v256
        %258 = vmatprep.subr.mxu0 0.0
        %259 = vmatpush1.msra.mxu0 0.0
        %260 = vmatprep.subr.mxu0 0.0
        %261 = vmatpush1.msra.mxu0 0.0
        %262 = vmatprep.subr.mxu0 0.0
        %263 = vmatpush1.msra.mxu0 0.0
        %264 = vmatprep.subr.mxu0 0.0
        %265 = vmatpush1.msra.mxu0 0.0
        %266 = vmatprep.subr.mxu0 0.0
        %267 = vmatpush1.msra.mxu0 0.0
        %268 = vmatprep.subr.mxu0 0.0
        %269 = vmatpush1.msra.mxu0 0.0
        %270 = vmatprep.subr.mxu0 0.0
        %271 = vmatpush1.msra.mxu0 0.0
        %272 = vmatprep.subr.mxu0 0.0
        %273 = vmatpush1.msra.mxu0 0.0
        %274 = vmatprep.subr.mxu0 0.0
        %275 = vmatpush1.msra.mxu0 0.0
        %276 = vmatprep.subr.mxu0 0.0
        %277 = vmatpush1.msra.mxu0 0.0
        %278 = vmatprep.subr.mxu0 0.0
        %279 = vmatpush1.msra.mxu0 0.0
        %280 = vmatprep.subr.mxu0 0.0
        %281 = vmatpush1.msra.mxu0 0.0
        %282 = vmatprep.subr.mxu0 0.0
        %283 = vmatpush1.msra.mxu0 0.0
        %284 = vmatprep.subr.mxu0 0.0
        %285 = vmatpush1.msra.mxu0 0.0
        %286 = vmatprep.subr.mxu0 0.0
        %287 = vmatpush1.msra.mxu0 0.0
        %288 = vmatprep.subr.mxu0 0.0
        %289 = vmatpush1.msra.mxu0 0.0
        %290 = vmatprep.subr.mxu0 0.0
        %291 = vmatpush1.msra.mxu0 0.0
        %292 = vmatprep.subr.mxu0 0.0
        %293 = vmatpush1.msra.mxu0 0.0
        %294 = vmatprep.subr.mxu0 0.0
        %295 = vmatpush1.msra.mxu0 0.0
        %296 = vmatprep.subr.mxu0 0.0
        %297 = vmatpush1.msra.mxu0 0.0
        %298 = vmatprep.subr.mxu0 0.0
        %299 = vmatpush1.msra.mxu0 0.0
        %300 = vmatprep.subr.mxu0 0.0
        %301 = vmatpush1.msra.mxu0 0.0
        %302 = vmatprep.subr.mxu0 0.0
        %303 = vmatpush1.msra.mxu0 0.0
        %304 = vmatprep.subr.mxu0 0.0
        %305 = vmatpush1.msra.mxu0 0.0
        %306 = vmatprep.subr.mxu0 0.0
        %307 = vmatpush1.msra.mxu0 0.0
        %308 = vmatprep.subr.mxu0 0.0
        %309 = vmatpush1.msra.mxu0 0.0
        %310 = vmatprep.subr.mxu0 0.0
        %311 = vmatpush1.msra.mxu0 0.0
        %312 = vmatprep.subr.mxu0 0.0
        %313 = vmatpush1.msra.mxu0 0.0
        %314 = vmatprep.subr.mxu0 0.0
        %315 = vmatpush1.msra.mxu0 0.0
        %316 = vmatprep.subr.mxu0 0.0
        %317 = vmatpush1.msra.mxu0 0.0
        %318 = vmatprep.subr.mxu0 0.0
        %319 = vmatpush1.msra.mxu0 0.0
        %320 = vmatprep.mubr.f32.mxu0 0.0
        %v321 = vand.u32 %v253, 4294901760
        %v322 = vsub.f32 %v253, %v321
        %v323 = vand.u32 %v322, 4294901760
        %v324 = vsub.f32 %v322, %v323
        %v325 = vand.u32 %v324, 4294901760
        %326 = vmatmul.mubr.f32.gmra.mrb[0].mxu0 %v325
        %v327 = vpop.f32.mrb[0].mxu0
        %v328 = vadd.f32 0.0, %v327
        %v329 = vpop.f32.mrb[0].mxu0
        %330 = vdwg.mxu0
        %331 = vmatprep.subr.mxu0 0.0
        %v332 = vand.u32 %v249, 4294901760
        %v333 = vsub.f32 %v249, %v332
        %v334 = vand.u32 %v333, 4294901760
        %v335 = vsub.f32 %v333, %v334
        %v336 = vand.u32 %v335, 4294901760
        %337 = vmatpush1.msra.mxu0 %v336
        %338 = vmatprep.subr.mxu0 0.0
        %339 = vmatpush1.msra.mxu0 0.0
        %340 = vmatprep.subr.mxu0 0.0
        %341 = vmatpush1.msra.mxu0 0.0
        %342 = vmatprep.subr.mxu0 0.0
        %343 = vmatpush1.msra.mxu0 0.0
        %344 = vmatprep.subr.mxu0 0.0
        %345 = vmatpush1.msra.mxu0 0.0
        %346 = vmatprep.subr.mxu0 0.0
        %347 = vmatpush1.msra.mxu0 0.0
        %348 = vmatprep.subr.mxu0 0.0
        %349 = vmatpush1.msra.mxu0 0.0
        %350 = vmatprep.subr.mxu0 0.0
        %351 = vmatpush1.msra.mxu0 0.0
        %352 = vmatprep.subr.mxu0 0.0
        %353 = vmatpush1.msra.mxu0 0.0
        %354 = vmatprep.subr.mxu0 0.0
        %355 = vmatpush1.msra.mxu0 0.0
        %356 = vmatprep.subr.mxu0 0.0
        %357 = vmatpush1.msra.mxu0 0.0
        %358 = vmatprep.subr.mxu0 0.0
        %359 = vmatpush1.msra.mxu0 0.0
        %360 = vmatprep.subr.mxu0 0.0
        %361 = vmatpush1.msra.mxu0 0.0
        %362 = vmatprep.subr.mxu0 0.0
        %363 = vmatpush1.msra.mxu0 0.0
        %364 = vmatprep.subr.mxu0 0.0
        %365 = vmatpush1.msra.mxu0 0.0
        %366 = vmatprep.subr.mxu0 0.0
        %367 = vmatpush1.msra.mxu0 0.0
        %368 = vmatprep.subr.mxu0 0.0
        %369 = vmatpush1.msra.mxu0 0.0
        %370 = vmatprep.subr.mxu0 0.0
        %371 = vmatpush1.msra.mxu0 0.0
        %372 = vmatprep.subr.mxu0 0.0
        %373 = vmatpush1.msra.mxu0 0.0
        %374 = vmatprep.subr.mxu0 0.0
        %375 = vmatpush1.msra.mxu0 0.0
        %376 = vmatprep.subr.mxu0 0.0
        %377 = vmatpush1.msra.mxu0 0.0
        %378 = vmatprep.subr.mxu0 0.0
        %379 = vmatpush1.msra.mxu0 0.0
        %380 = vmatprep.subr.mxu0 0.0
        %381 = vmatpush1.msra.mxu0 0.0
        %382 = vmatprep.subr.mxu0 0.0
        %383 = vmatpush1.msra.mxu0 0.0
        %384 = vmatprep.subr.mxu0 0.0
        %385 = vmatpush1.msra.mxu0 0.0
        %386 = vmatprep.subr.mxu0 0.0
        %387 = vmatpush1.msra.mxu0 0.0
        %388 = vmatprep.subr.mxu0 0.0
        %389 = vmatpush1.msra.mxu0 0.0
        %390 = vmatprep.subr.mxu0 0.0
        %391 = vmatpush1.msra.mxu0 0.0
        %392 = vmatprep.subr.mxu0 0.0
        %393 = vmatpush1.msra.mxu0 0.0
        %394 = vmatprep.subr.mxu0 0.0
        %395 = vmatpush1.msra.mxu0 0.0
        %396 = vmatprep.subr.mxu0 0.0
        %397 = vmatpush1.msra.mxu0 0.0
        %398 = vmatprep.subr.mxu0 0.0
        %399 = vmatpush1.msra.mxu0 0.0
        %400 = vmatprep.mubr.f32.mxu0 0.0
        %v401 = vand.u32 %v253, 4294901760
        %402 = vmatmul.mubr.f32.gmra.mrb[0].mxu0 %v401
        %v403 = vpop.f32.mrb[0].mxu0
        %v404 = vadd.f32 %v328, %v403
        %v405 = vpop.f32.mrb[0].mxu0
        %406 = vdwg.mxu0
        %407 = vmatprep.subr.mxu0 0.0
        %v408 = vand.u32 %v249, 4294901760
        %v409 = vsub.f32 %v249, %v408
        %410 = vmatpush1.msra.mxu0 %v409
        %411 = vmatprep.subr.mxu0 0.0
        %412 = vmatpush1.msra.mxu0 0.0
        %413 = vmatprep.subr.mxu0 0.0
        %414 = vmatpush1.msra.mxu0 0.0
        %415 = vmatprep.subr.mxu0 0.0
        %416 = vmatpush1.msra.mxu0 0.0
        %417 = vmatprep.subr.mxu0 0.0
        %418 = vmatpush1.msra.mxu0 0.0
        %419 = vmatprep.subr.mxu0 0.0
        %420 = vmatpush1.msra.mxu0 0.0
        %421 = vmatprep.subr.mxu0 0.0
        %422 = vmatpush1.msra.mxu0 0.0
        %423 = vmatprep.subr.mxu0 0.0
        %424 = vmatpush1.msra.mxu0 0.0
        %425 = vmatprep.subr.mxu0 0.0
        %426 = vmatpush1.msra.mxu0 0.0
        %427 = vmatprep.subr.mxu0 0.0
        %428 = vmatpush1.msra.mxu0 0.0
        %429 = vmatprep.subr.mxu0 0.0
        %430 = vmatpush1.msra.mxu0 0.0
        %431 = vmatprep.subr.mxu0 0.0
        %432 = vmatpush1.msra.mxu0 0.0
        %433 = vmatprep.subr.mxu0 0.0
        %434 = vmatpush1.msra.mxu0 0.0
        %435 = vmatprep.subr.mxu0 0.0
        %436 = vmatpush1.msra.mxu0 0.0
        %437 = vmatprep.subr.mxu0 0.0
        %438 = vmatpush1.msra.mxu0 0.0
        %439 = vmatprep.subr.mxu0 0.0
        %440 = vmatpush1.msra.mxu0 0.0
        %441 = vmatprep.subr.mxu0 0.0
        %442 = vmatpush1.msra.mxu0 0.0
        %443 = vmatprep.subr.mxu0 0.0
        %444 = vmatpush1.msra.mxu0 0.0
        %445 = vmatprep.subr.mxu0 0.0
        %446 = vmatpush1.msra.mxu0 0.0
        %447 = vmatprep.subr.mxu0 0.0
        %448 = vmatpush1.msra.mxu0 0.0
        %449 = vmatprep.subr.mxu0 0.0
        %450 = vmatpush1.msra.mxu0 0.0
        %451 = vmatprep.subr.mxu0 0.0
        %452 = vmatpush1.msra.mxu0 0.0
        %453 = vmatprep.subr.mxu0 0.0
        %454 = vmatpush1.msra.mxu0 0.0
        %455 = vmatprep.subr.mxu0 0.0
        %456 = vmatpush1.msra.mxu0 0.0
        %457 = vmatprep.subr.mxu0 0.0
        %458 = vmatpush1.msra.mxu0 0.0
        %459 = vmatprep.subr.mxu0 0.0
        %460 = vmatpush1.msra.mxu0 0.0
        %461 = vmatprep.subr.mxu0 0.0
        %462 = vmatpush1.msra.mxu0 0.0
        %463 = vmatprep.subr.mxu0 0.0
        %464 = vmatpush1.msra.mxu0 0.0
        %465 = vmatprep.subr.mxu0 0.0
        %466 = vmatpush1.msra.mxu0 0.0
        %467 = vmatprep.subr.mxu0 0.0
        %468 = vmatpush1.msra.mxu0 0.0
        %469 = vmatprep.subr.mxu0 0.0
        %470 = vmatpush1.msra.mxu0 0.0
        %471 = vmatprep.subr.mxu0 0.0
        %472 = vmatpush1.msra.mxu0 0.0
        %473 = vmatprep.mubr.f32.mxu0 0.0
        %v474 = vand.u32 %v253, 4294901760
        %v475 = vsub.f32 %v253, %v474
        %476 = vmatmul.mubr.f32.gmra.mrb[0].mxu0 %v475
        %v477 = vpop.f32.mrb[0].mxu0
        %v478 = vadd.f32 %v404, %v477
        %v479 = vpop.f32.mrb[0].mxu0
        %480 = vdwg.mxu0
        %481 = vmatprep.subr.mxu0 0.0
        %v482 = vand.u32 %v249, 4294901760
        %483 = vmatpush1.msra.mxu0 %v482
        %484 = vmatprep.subr.mxu0 0.0
        %485 = vmatpush1.msra.mxu0 0.0
        %486 = vmatprep.subr.mxu0 0.0
        %487 = vmatpush1.msra.mxu0 0.0
        %488 = vmatprep.subr.mxu0 0.0
        %489 = vmatpush1.msra.mxu0 0.0
        %490 = vmatprep.subr.mxu0 0.0
        %491 = vmatpush1.msra.mxu0 0.0
        %492 = vmatprep.subr.mxu0 0.0
        %493 = vmatpush1.msra.mxu0 0.0
        %494 = vmatprep.subr.mxu0 0.0
        %495 = vmatpush1.msra.mxu0 0.0
        %496 = vmatprep.subr.mxu0 0.0
        %497 = vmatpush1.msra.mxu0 0.0
        %498 = vmatprep.subr.mxu0 0.0
        %499 = vmatpush1.msra.mxu0 0.0
        %500 = vmatprep.subr.mxu0 0.0
        %501 = vmatpush1.msra.mxu0 0.0
        %502 = vmatprep.subr.mxu0 0.0
        %503 = vmatpush1.msra.mxu0 0.0
        %504 = vmatprep.subr.mxu0 0.0
        %505 = vmatpush1.msra.mxu0 0.0
        %506 = vmatprep.subr.mxu0 0.0
        %507 = vmatpush1.msra.mxu0 0.0
        %508 = vmatprep.subr.mxu0 0.0
        %509 = vmatpush1.msra.mxu0 0.0
        %510 = vmatprep.subr.mxu0 0.0
        %511 = vmatpush1.msra.mxu0 0.0
        %512 = vmatprep.subr.mxu0 0.0
        %513 = vmatpush1.msra.mxu0 0.0
        %514 = vmatprep.subr.mxu0 0.0
        %515 = vmatpush1.msra.mxu0 0.0
        %516 = vmatprep.subr.mxu0 0.0
        %517 = vmatpush1.msra.mxu0 0.0
        %518 = vmatprep.subr.mxu0 0.0
        %519 = vmatpush1.msra.mxu0 0.0
        %520 = vmatprep.subr.mxu0 0.0
        %521 = vmatpush1.msra.mxu0 0.0
        %522 = vmatprep.subr.mxu0 0.0
        %523 = vmatpush1.msra.mxu0 0.0
        %524 = vmatprep.subr.mxu0 0.0
        %525 = vmatpush1.msra.mxu0 0.0
        %526 = vmatprep.subr.mxu0 0.0
        %527 = vmatpush1.msra.mxu0 0.0
        %528 = vmatprep.subr.mxu0 0.0
        %529 = vmatpush1.msra.mxu0 0.0
        %530 = vmatprep.subr.mxu0 0.0
        %531 = vmatpush1.msra.mxu0 0.0
        %532 = vmatprep.subr.mxu0 0.0
        %533 = vmatpush1.msra.mxu0 0.0
        %534 = vmatprep.subr.mxu0 0.0
        %535 = vmatpush1.msra.mxu0 0.0
        %536 = vmatprep.subr.mxu0 0.0
        %537 = vmatpush1.msra.mxu0 0.0
        %538 = vmatprep.subr.mxu0 0.0
        %539 = vmatpush1.msra.mxu0 0.0
        %540 = vmatprep.subr.mxu0 0.0
        %541 = vmatpush1.msra.mxu0 0.0
        %542 = vmatprep.subr.mxu0 0.0
        %543 = vmatpush1.msra.mxu0 0.0
        %544 = vmatprep.subr.mxu0 0.0
        %545 = vmatpush1.msra.mxu0 0.0
        %546 = vmatprep.mubr.f32.mxu0 0.0
        %v547 = vand.u32 %v253, 4294901760
        %v548 = vsub.f32 %v253, %v547
        %v549 = vand.u32 %v548, 4294901760
        %550 = vmatmul.mubr.f32.gmra.mrb[0].mxu0 %v549
        %v551 = vpop.f32.mrb[0].mxu0
        %v552 = vadd.f32 %v478, %v551
        %v553 = vpop.f32.mrb[0].mxu0
        %554 = vdwg.mxu0
        %555 = vmatprep.subr.mxu0 0.0
        %v556 = vand.u32 %v249, 4294901760
        %v557 = vsub.f32 %v249, %v556
        %v558 = vand.u32 %v557, 4294901760
        %559 = vmatpush1.msra.mxu0 %v558
        %560 = vmatprep.subr.mxu0 0.0
        %561 = vmatpush1.msra.mxu0 0.0
        %562 = vmatprep.subr.mxu0 0.0
        %563 = vmatpush1.msra.mxu0 0.0
        %564 = vmatprep.subr.mxu0 0.0
        %565 = vmatpush1.msra.mxu0 0.0
        %566 = vmatprep.subr.mxu0 0.0
        %567 = vmatpush1.msra.mxu0 0.0
        %568 = vmatprep.subr.mxu0 0.0
        %569 = vmatpush1.msra.mxu0 0.0
        %570 = vmatprep.subr.mxu0 0.0
        %571 = vmatpush1.msra.mxu0 0.0
        %572 = vmatprep.subr.mxu0 0.0
        %573 = vmatpush1.msra.mxu0 0.0
        %574 = vmatprep.subr.mxu0 0.0
        %575 = vmatpush1.msra.mxu0 0.0
        %576 = vmatprep.subr.mxu0 0.0
        %577 = vmatpush1.msra.mxu0 0.0
        %578 = vmatprep.subr.mxu0 0.0
        %579 = vmatpush1.msra.mxu0 0.0
        %580 = vmatprep.subr.mxu0 0.0
        %581 = vmatpush1.msra.mxu0 0.0
        %582 = vmatprep.subr.mxu0 0.0
        %583 = vmatpush1.msra.mxu0 0.0
        %584 = vmatprep.subr.mxu0 0.0
        %585 = vmatpush1.msra.mxu0 0.0
        %586 = vmatprep.subr.mxu0 0.0
        %587 = vmatpush1.msra.mxu0 0.0
        %588 = vmatprep.subr.mxu0 0.0
        %589 = vmatpush1.msra.mxu0 0.0
        %590 = vmatprep.subr.mxu0 0.0
        %591 = vmatpush1.msra.mxu0 0.0
        %592 = vmatprep.subr.mxu0 0.0
        %593 = vmatpush1.msra.mxu0 0.0
        %594 = vmatprep.subr.mxu0 0.0
        %595 = vmatpush1.msra.mxu0 0.0
        %596 = vmatprep.subr.mxu0 0.0
        %597 = vmatpush1.msra.mxu0 0.0
        %598 = vmatprep.subr.mxu0 0.0
        %599 = vmatpush1.msra.mxu0 0.0
        %600 = vmatprep.subr.mxu0 0.0
        %601 = vmatpush1.msra.mxu0 0.0
        %602 = vmatprep.subr.mxu0 0.0
        %603 = vmatpush1.msra.mxu0 0.0
        %604 = vmatprep.subr.mxu0 0.0
        %605 = vmatpush1.msra.mxu0 0.0
        %606 = vmatprep.subr.mxu0 0.0
        %607 = vmatpush1.msra.mxu0 0.0
        %608 = vmatprep.subr.mxu0 0.0
        %609 = vmatpush1.msra.mxu0 0.0
        %610 = vmatprep.subr.mxu0 0.0
        %611 = vmatpush1.msra.mxu0 0.0
        %612 = vmatprep.subr.mxu0 0.0
        %613 = vmatpush1.msra.mxu0 0.0
        %614 = vmatprep.subr.mxu0 0.0
        %615 = vmatpush1.msra.mxu0 0.0
        %616 = vmatprep.subr.mxu0 0.0
        %617 = vmatpush1.msra.mxu0 0.0
        %618 = vmatprep.subr.mxu0 0.0
        %619 = vmatpush1.msra.mxu0 0.0
        %620 = vmatprep.subr.mxu0 0.0
        %621 = vmatpush1.msra.mxu0 0.0
        %622 = vmatprep.mubr.f32.mxu0 0.0
        %v623 = vand.u32 %v253, 4294901760
        %624 = vmatmul.mubr.f32.gmra.mrb[0].mxu0 %v623
        %v625 = vpop.f32.mrb[0].mxu0
        %v626 = vadd.f32 %v552, %v625
        %v627 = vpop.f32.mrb[0].mxu0
        %628 = vdwg.mxu0
        %629 = vmatprep.subr.mxu0 0.0
        %v630 = vand.u32 %v249, 4294901760
        %631 = vmatpush1.msra.mxu0 %v630
        %632 = vmatprep.subr.mxu0 0.0
        %633 = vmatpush1.msra.mxu0 0.0
        %634 = vmatprep.subr.mxu0 0.0
        %635 = vmatpush1.msra.mxu0 0.0
        %636 = vmatprep.subr.mxu0 0.0
        %637 = vmatpush1.msra.mxu0 0.0
        %638 = vmatprep.subr.mxu0 0.0
        %639 = vmatpush1.msra.mxu0 0.0
        %640 = vmatprep.subr.mxu0 0.0
        %641 = vmatpush1.msra.mxu0 0.0
        %642 = vmatprep.subr.mxu0 0.0
        %643 = vmatpush1.msra.mxu0 0.0
        %644 = vmatprep.subr.mxu0 0.0
        %645 = vmatpush1.msra.mxu0 0.0
        %646 = vmatprep.subr.mxu0 0.0
        %647 = vmatpush1.msra.mxu0 0.0
        %648 = vmatprep.subr.mxu0 0.0
        %649 = vmatpush1.msra.mxu0 0.0
        %650 = vmatprep.subr.mxu0 0.0
        %651 = vmatpush1.msra.mxu0 0.0
        %652 = vmatprep.subr.mxu0 0.0
        %653 = vmatpush1.msra.mxu0 0.0
        %654 = vmatprep.subr.mxu0 0.0
        %655 = vmatpush1.msra.mxu0 0.0
        %656 = vmatprep.subr.mxu0 0.0
        %657 = vmatpush1.msra.mxu0 0.0
        %658 = vmatprep.subr.mxu0 0.0
        %659 = vmatpush1.msra.mxu0 0.0
        %660 = vmatprep.subr.mxu0 0.0
        %661 = vmatpush1.msra.mxu0 0.0
        %662 = vmatprep.subr.mxu0 0.0
        %663 = vmatpush1.msra.mxu0 0.0
        %664 = vmatprep.subr.mxu0 0.0
        %665 = vmatpush1.msra.mxu0 0.0
        %666 = vmatprep.subr.mxu0 0.0
        %667 = vmatpush1.msra.mxu0 0.0
        %668 = vmatprep.subr.mxu0 0.0
        %669 = vmatpush1.msra.mxu0 0.0
        %670 = vmatprep.subr.mxu0 0.0
        %671 = vmatpush1.msra.mxu0 0.0
        %672 = vmatprep.subr.mxu0 0.0
        %673 = vmatpush1.msra.mxu0 0.0
        %674 = vmatprep.subr.mxu0 0.0
        %675 = vmatpush1.msra.mxu0 0.0
        %676 = vmatprep.subr.mxu0 0.0
        %677 = vmatpush1.msra.mxu0 0.0
        %678 = vmatprep.subr.mxu0 0.0
        %679 = vmatpush1.msra.mxu0 0.0
        %680 = vmatprep.subr.mxu0 0.0
        %681 = vmatpush1.msra.mxu0 0.0
        %682 = vmatprep.subr.mxu0 0.0
        %683 = vmatpush1.msra.mxu0 0.0
        %684 = vmatprep.subr.mxu0 0.0
        %685 = vmatpush1.msra.mxu0 0.0
        %686 = vmatprep.subr.mxu0 0.0
        %687 = vmatpush1.msra.mxu0 0.0
        %688 = vmatprep.subr.mxu0 0.0
        %689 = vmatpush1.msra.mxu0 0.0
        %690 = vmatprep.subr.mxu0 0.0
        %691 = vmatpush1.msra.mxu0 0.0
        %692 = vmatprep.subr.mxu0 0.0
        %693 = vmatpush1.msra.mxu0 0.0
        %694 = vmatprep.mubr.f32.mxu0 0.0
        %v695 = vand.u32 %v253, 4294901760
        %696 = vmatmul.mubr.f32.gmra.mrb[0].mxu0 %v695
        %v697 = vpop.f32.mrb[0].mxu0
        %v698 = vadd.f32 %v626, %v697
        %v699 = vpop.f32.mrb[0].mxu0
        %700 = vdwg.mxu0
        %v701 = vadd.f32 %v250, %v698
        %vm702 = vcmask 253952
        %703 = vst.msk [vmem:[#allocation2] sm:$0x1] %vm702, %v701
        %v704 = vld [vmem:[#allocation3] sm:$0x1]
        %vm705 = vcmask 57344
        %v706 = vsel %vm705, %v248, 0.0
        %707 = vadd.xlane.f32.xlu0 %v706
        %v708 = vpop.xlane.xlu0 %707
        %v709 = vadd.f32 %v704, %v708
        %vm710 = vcmask 0
        %711 = vst.msk [vmem:[#allocation3] sm:$0x1] %vm710, %v709
        // Predicated region
        $region41: #{tpu_custom_call.1} parent=35 // pred_check
          %p712 = pneg %p240
        $region42: #{tpu_custom_call.1} parent=35 // pred_check_branch
          %714 = sbr.rel (%p712) target = $region44
        $region43: #{tpu_custom_call.1} parent=35 // pred_region
          %v715 = vld [vmem:[#allocation3] sm:$0x1]
          %v716 = vmax.f32 %v715, 1.0
          %v717 = vrcp.pop %v716
          %v718 = vld [vmem:[#allocation2] sm:$0x1]
          %720 = vset.pattern.permute.xlu0 0
          %721 = vperm.xlu0 %720, %v717
          %v722 = vpop.permute.xlu0 %721
          %v724 = vlaneseq
          %v725 = vshrl.u32 %v724, 7
          %v726 = vsub.s32 0, %v725
          %v727 = vrot.slane %v722, %v726
          %v728 = vmul.f32 %v718, %v727
          %v729 = vld [vmem:[%s2] sm:$0xff]
          %v730 = vld [vmem:[%s2 + $0x8] sm:$0xff]
          %v731 = vld [vmem:[%s2 + $0x10] sm:$0xff]
          %v732 = vld [vmem:[%s2 + $0x18] sm:$0xff]
          %v733 = vld [vmem:[%s2 + $0x20] sm:$0xff]
          %v734 = vld [vmem:[%s2 + $0x28] sm:$0xff]
          %v735 = vld [vmem:[%s2 + $0x30] sm:$0xff]
          %v736 = vld [vmem:[%s2 + $0x38] sm:$0xff]
          %v737 = vld [vmem:[%s2 + $0x40] sm:$0xff]
          %v738 = vld [vmem:[%s2 + $0x48] sm:$0xff]
          %v739 = vld [vmem:[%s2 + $0x50] sm:$0xff]
          %v740 = vld [vmem:[%s2 + $0x58] sm:$0xff]
          %v741 = vld [vmem:[%s2 + $0x60] sm:$0xff]
          %v742 = vld [vmem:[%s2 + $0x68] sm:$0xff]
          %v743 = vld [vmem:[%s2 + $0x70] sm:$0xff]
          %v744 = vld [vmem:[%s2 + $0x78] sm:$0xff]
          %v745 = vld [vmem:[%s3] sm:$0x1]
          %vm746 = vcmask 261120
          %v748 = vsel %vm746, %v728, 0
          %v751 = vsel %vm746, %v729, 0
          %v754 = vsel %vm746, %v730, 0
          %v757 = vsel %vm746, %v731, 0
          %v760 = vsel %vm746, %v732, 0
          %v763 = vsel %vm746, %v733, 0
          %v766 = vsel %vm746, %v734, 0
          %v769 = vsel %vm746, %v735, 0
          %v772 = vsel %vm746, %v736, 0
          %v775 = vsel %vm746, %v737, 0
          %v778 = vsel %vm746, %v738, 0
          %v781 = vsel %vm746, %v739, 0
          %v784 = vsel %vm746, %v740, 0
          %v787 = vsel %vm746, %v741, 0
          %v790 = vsel %vm746, %v742, 0
          %v793 = vsel %vm746, %v743, 0
          %v796 = vsel %vm746, %v744, 0
          %798 = vmatprep.subr.mxu0 0.0
          %v799 = vand.u32 %v751, 4294901760
          %800 = vmatpush1.xpose.msra.mxu0 %v799
          %801 = vmatprep.subr.mxu0 0.0
          %v802 = vand.u32 %v754, 4294901760
          %803 = vmatpush1.xpose.msra.mxu0 %v802
          %804 = vmatprep.subr.mxu0 0.0
          %v805 = vand.u32 %v757, 4294901760
          %806 = vmatpush1.xpose.msra.mxu0 %v805
          %807 = vmatprep.subr.mxu0 0.0
          %v808 = vand.u32 %v760, 4294901760
          %809 = vmatpush1.xpose.msra.mxu0 %v808
          %810 = vmatprep.subr.mxu0 0.0
          %v811 = vand.u32 %v763, 4294901760
          %812 = vmatpush1.xpose.msra.mxu0 %v811
          %813 = vmatprep.subr.mxu0 0.0
          %v814 = vand.u32 %v766, 4294901760
          %815 = vmatpush1.xpose.msra.mxu0 %v814
          %816 = vmatprep.subr.mxu0 0.0
          %v817 = vand.u32 %v769, 4294901760
          %818 = vmatpush1.xpose.msra.mxu0 %v817
          %819 = vmatprep.subr.mxu0 0.0
          %v820 = vand.u32 %v772, 4294901760
          %821 = vmatpush1.xpose.msra.mxu0 %v820
          %822 = vmatprep.subr.mxu0 0.0
          %v823 = vand.u32 %v775, 4294901760
          %824 = vmatpush1.xpose.msra.mxu0 %v823
          %825 = vmatprep.subr.mxu0 0.0
          %v826 = vand.u32 %v778, 4294901760
          %827 = vmatpush1.xpose.msra.mxu0 %v826
          %828 = vmatprep.subr.mxu0 0.0
          %v829 = vand.u32 %v781, 4294901760
          %830 = vmatpush1.xpose.msra.mxu0 %v829
          %831 = vmatprep.subr.mxu0 0.0
          %v832 = vand.u32 %v784, 4294901760
          %833 = vmatpush1.xpose.msra.mxu0 %v832
          %834 = vmatprep.subr.mxu0 0.0
          %v835 = vand.u32 %v787, 4294901760
          %836 = vmatpush1.xpose.msra.mxu0 %v835
          %837 = vmatprep.subr.mxu0 0.0
          %v838 = vand.u32 %v790, 4294901760
          %839 = vmatpush1.xpose.msra.mxu0 %v838
          %840 = vmatprep.subr.mxu0 0.0
          %v841 = vand.u32 %v793, 4294901760
          %842 = vmatpush1.xpose.msra.mxu0 %v841
          %843 = vmatprep.subr.mxu0 0.0
          %v844 = vand.u32 %v796, 4294901760
          %845 = vmatpush1.xpose.msra.mxu0 %v844
          %846 = vmatprep.subr.mxu0 0.0
          %847 = vmatpush1.xpose.msra.mxu0 0.0
          %848 = vmatprep.subr.mxu0 0.0
          %849 = vmatpush1.xpose.msra.mxu0 0.0
          %850 = vmatprep.subr.mxu0 0.0
          %851 = vmatpush1.xpose.msra.mxu0 0.0
          %852 = vmatprep.subr.mxu0 0.0
          %853 = vmatpush1.xpose.msra.mxu0 0.0
          %854 = vmatprep.subr.mxu0 0.0
          %855 = vmatpush1.xpose.msra.mxu0 0.0
          %856 = vmatprep.subr.mxu0 0.0
          %857 = vmatpush1.xpose.msra.mxu0 0.0
          %858 = vmatprep.subr.mxu0 0.0
          %859 = vmatpush1.xpose.msra.mxu0 0.0
          %860 = vmatprep.subr.mxu0 0.0
          %861 = vmatpush1.xpose.msra.mxu0 0.0
          %862 = vmatprep.subr.mxu0 0.0
          %863 = vmatpush1.xpose.msra.mxu0 0.0
          %864 = vmatprep.subr.mxu0 0.0
          %865 = vmatpush1.xpose.msra.mxu0 0.0
          %866 = vmatprep.subr.mxu0 0.0
          %867 = vmatpush1.xpose.msra.mxu0 0.0
          %868 = vmatprep.subr.mxu0 0.0
          %869 = vmatpush1.xpose.msra.mxu0 0.0
          %870 = vmatprep.subr.mxu0 0.0
          %871 = vmatpush1.xpose.msra.mxu0 0.0
          %872 = vmatprep.subr.mxu0 0.0
          %873 = vmatpush1.xpose.msra.mxu0 0.0
          %874 = vmatprep.subr.mxu0 0.0
          %875 = vmatpush1.xpose.msra.mxu0 0.0
          %876 = vmatprep.subr.mxu0 0.0
          %877 = vmatpush1.xpose.msra.mxu0 0.0
          %878 = vmatprep.mubr.f32.mxu0 0.0
          %v879 = vand.u32 %v748, 4294901760
          %v880 = vsub.f32 %v748, %v879
          %v881 = vand.u32 %v880, 4294901760
          %v882 = vsub.f32 %v880, %v881
          %v883 = vand.u32 %v882, 4294901760
          %884 = vmatmul.mubr.f32.gmra.mrb[0].mxu0 %v883
          %v885 = vpop.f32.mrb[0].mxu0
          %v886 = vadd.f32 %v745, %v885
          %v887 = vpop.f32.mrb[0].mxu0
          %888 = vdwg.mxu0
          %889 = vmatprep.subr.mxu0 0.0
          %v890 = vand.u32 %v751, 4294901760
          %v891 = vsub.f32 %v751, %v890
          %v892 = vand.u32 %v891, 4294901760
          %v893 = vsub.f32 %v891, %v892
          %v894 = vand.u32 %v893, 4294901760
          %895 = vmatpush1.xpose.msra.mxu0 %v894
          %896 = vmatprep.subr.mxu0 0.0
          %v897 = vand.u32 %v754, 4294901760
          %v898 = vsub.f32 %v754, %v897
          %v899 = vand.u32 %v898, 4294901760
          %v900 = vsub.f32 %v898, %v899
          %v901 = vand.u32 %v900, 4294901760
          %902 = vmatpush1.xpose.msra.mxu0 %v901
          %903 = vmatprep.subr.mxu0 0.0
          %v904 = vand.u32 %v757, 4294901760
          %v905 = vsub.f32 %v757, %v904
          %v906 = vand.u32 %v905, 4294901760
          %v907 = vsub.f32 %v905, %v906
          %v908 = vand.u32 %v907, 4294901760
          %909 = vmatpush1.xpose.msra.mxu0 %v908
          %910 = vmatprep.subr.mxu0 0.0
          %v911 = vand.u32 %v760, 4294901760
          %v912 = vsub.f32 %v760, %v911
          %v913 = vand.u32 %v912, 4294901760
          %v914 = vsub.f32 %v912, %v913
          %v915 = vand.u32 %v914, 4294901760
          %916 = vmatpush1.xpose.msra.mxu0 %v915
          %917 = vmatprep.subr.mxu0 0.0
          %v918 = vand.u32 %v763, 4294901760
          %v919 = vsub.f32 %v763, %v918
          %v920 = vand.u32 %v919, 4294901760
          %v921 = vsub.f32 %v919, %v920
          %v922 = vand.u32 %v921, 4294901760
          %923 = vmatpush1.xpose.msra.mxu0 %v922
          %924 = vmatprep.subr.mxu0 0.0
          %v925 = vand.u32 %v766, 4294901760
          %v926 = vsub.f32 %v766, %v925
          %v927 = vand.u32 %v926, 4294901760
          %v928 = vsub.f32 %v926, %v927
          %v929 = vand.u32 %v928, 4294901760
          %930 = vmatpush1.xpose.msra.mxu0 %v929
          %931 = vmatprep.subr.mxu0 0.0
          %v932 = vand.u32 %v769, 4294901760
          %v933 = vsub.f32 %v769, %v932
          %v934 = vand.u32 %v933, 4294901760
          %v935 = vsub.f32 %v933, %v934
          %v936 = vand.u32 %v935, 4294901760
          %937 = vmatpush1.xpose.msra.mxu0 %v936
          %938 = vmatprep.subr.mxu0 0.0
          %v939 = vand.u32 %v772, 4294901760
          %v940 = vsub.f32 %v772, %v939
          %v941 = vand.u32 %v940, 4294901760
          %v942 = vsub.f32 %v940, %v941
          %v943 = vand.u32 %v942, 4294901760
          %944 = vmatpush1.xpose.msra.mxu0 %v943
          %945 = vmatprep.subr.mxu0 0.0
          %v946 = vand.u32 %v775, 4294901760
          %v947 = vsub.f32 %v775, %v946
          %v948 = vand.u32 %v947, 4294901760
          %v949 = vsub.f32 %v947, %v948
          %v950 = vand.u32 %v949, 4294901760
          %951 = vmatpush1.xpose.msra.mxu0 %v950
          %952 = vmatprep.subr.mxu0 0.0
          %v953 = vand.u32 %v778, 4294901760
          %v954 = vsub.f32 %v778, %v953
          %v955 = vand.u32 %v954, 4294901760
          %v956 = vsub.f32 %v954, %v955
          %v957 = vand.u32 %v956, 4294901760
          %958 = vmatpush1.xpose.msra.mxu0 %v957
          %959 = vmatprep.subr.mxu0 0.0
          %v960 = vand.u32 %v781, 4294901760
          %v961 = vsub.f32 %v781, %v960
          %v962 = vand.u32 %v961, 4294901760
          %v963 = vsub.f32 %v961, %v962
          %v964 = vand.u32 %v963, 4294901760
          %965 = vmatpush1.xpose.msra.mxu0 %v964
          %966 = vmatprep.subr.mxu0 0.0
          %v967 = vand.u32 %v784, 4294901760
          %v968 = vsub.f32 %v784, %v967
          %v969 = vand.u32 %v968, 4294901760
          %v970 = vsub.f32 %v968, %v969
          %v971 = vand.u32 %v970, 4294901760
          %972 = vmatpush1.xpose.msra.mxu0 %v971
          %973 = vmatprep.subr.mxu0 0.0
          %v974 = vand.u32 %v787, 4294901760
          %v975 = vsub.f32 %v787, %v974
          %v976 = vand.u32 %v975, 4294901760
          %v977 = vsub.f32 %v975, %v976
          %v978 = vand.u32 %v977, 4294901760
          %979 = vmatpush1.xpose.msra.mxu0 %v978
          %980 = vmatprep.subr.mxu0 0.0
          %v981 = vand.u32 %v790, 4294901760
          %v982 = vsub.f32 %v790, %v981
          %v983 = vand.u32 %v982, 4294901760
          %v984 = vsub.f32 %v982, %v983
          %v985 = vand.u32 %v984, 4294901760
          %986 = vmatpush1.xpose.msra.mxu0 %v985
          %987 = vmatprep.subr.mxu0 0.0
          %v988 = vand.u32 %v793, 4294901760
          %v989 = vsub.f32 %v793, %v988
          %v990 = vand.u32 %v989, 4294901760
          %v991 = vsub.f32 %v989, %v990
          %v992 = vand.u32 %v991, 4294901760
          %993 = vmatpush1.xpose.msra.mxu0 %v992
          %994 = vmatprep.subr.mxu0 0.0
          %v995 = vand.u32 %v796, 4294901760
          %v996 = vsub.f32 %v796, %v995
          %v997 = vand.u32 %v996, 4294901760
          %v998 = vsub.f32 %v996, %v997
          %v999 = vand.u32 %v998, 4294901760
          %1000 = vmatpush1.xpose.msra.mxu0 %v999
          %1001 = vmatprep.subr.mxu0 0.0
          %1002 = vmatpush1.xpose.msra.mxu0 0.0
          %1003 = vmatprep.subr.mxu0 0.0
          %1004 = vmatpush1.xpose.msra.mxu0 0.0
          %1005 = vmatprep.subr.mxu0 0.0
          %1006 = vmatpush1.xpose.msra.mxu0 0.0
          %1007 = vmatprep.subr.mxu0 0.0
          %1008 = vmatpush1.xpose.msra.mxu0 0.0
          %1009 = vmatprep.subr.mxu0 0.0
          %1010 = vmatpush1.xpose.msra.mxu0 0.0
          %1011 = vmatprep.subr.mxu0 0.0
          %1012 = vmatpush1.xpose.msra.mxu0 0.0
          %1013 = vmatprep.subr.mxu0 0.0
          %1014 = vmatpush1.xpose.msra.mxu0 0.0
          %1015 = vmatprep.subr.mxu0 0.0
          %1016 = vmatpush1.xpose.msra.mxu0 0.0
          %1017 = vmatprep.subr.mxu0 0.0
          %1018 = vmatpush1.xpose.msra.mxu0 0.0
          %1019 = vmatprep.subr.mxu0 0.0
          %1020 = vmatpush1.xpose.msra.mxu0 0.0
          %1021 = vmatprep.subr.mxu0 0.0
          %1022 = vmatpush1.xpose.msra.mxu0 0.0
          %1023 = vmatprep.subr.mxu0 0.0
          %1024 = vmatpush1.xpose.msra.mxu0 0.0
          %1025 = vmatprep.subr.mxu0 0.0
          %1026 = vmatpush1.xpose.msra.mxu0 0.0
          %1027 = vmatprep.subr.mxu0 0.0
          %1028 = vmatpush1.xpose.msra.mxu0 0.0
          %1029 = vmatprep.subr.mxu0 0.0
          %1030 = vmatpush1.xpose.msra.mxu0 0.0
          %1031 = vmatprep.subr.mxu0 0.0
          %1032 = vmatpush1.xpose.msra.mxu0 0.0
          %1033 = vmatprep.mubr.f32.mxu0 0.0
          %v1034 = vand.u32 %v748, 4294901760
          %1035 = vmatmul.mubr.f32.gmra.mrb[0].mxu0 %v1034
          %v1036 = vpop.f32.mrb[0].mxu0
          %v1037 = vadd.f32 %v886, %v1036
          %v1038 = vpop.f32.mrb[0].mxu0
          %1039 = vdwg.mxu0
          %1040 = vmatprep.subr.mxu0 0.0
          %v1041 = vand.u32 %v751, 4294901760
          %v1042 = vsub.f32 %v751, %v1041
          %1043 = vmatpush1.xpose.msra.mxu0 %v1042
          %1044 = vmatprep.subr.mxu0 0.0
          %v1045 = vand.u32 %v754, 4294901760
          %v1046 = vsub.f32 %v754, %v1045
          %1047 = vmatpush1.xpose.msra.mxu0 %v1046
          %1048 = vmatprep.subr.mxu0 0.0
          %v1049 = vand.u32 %v757, 4294901760
          %v1050 = vsub.f32 %v757, %v1049
          %1051 = vmatpush1.xpose.msra.mxu0 %v1050
          %1052 = vmatprep.subr.mxu0 0.0
          %v1053 = vand.u32 %v760, 4294901760
          %v1054 = vsub.f32 %v760, %v1053
          %1055 = vmatpush1.xpose.msra.mxu0 %v1054
          %1056 = vmatprep.subr.mxu0 0.0
          %v1057 = vand.u32 %v763, 4294901760
          %v1058 = vsub.f32 %v763, %v1057
          %1059 = vmatpush1.xpose.msra.mxu0 %v1058
          %1060 = vmatprep.subr.mxu0 0.0
          %v1061 = vand.u32 %v766, 4294901760
          %v1062 = vsub.f32 %v766, %v1061
          %1063 = vmatpush1.xpose.msra.mxu0 %v1062
          %1064 = vmatprep.subr.mxu0 0.0
          %v1065 = vand.u32 %v769, 4294901760
          %v1066 = vsub.f32 %v769, %v1065
          %1067 = vmatpush1.xpose.msra.mxu0 %v1066
          %1068 = vmatprep.subr.mxu0 0.0
          %v1069 = vand.u32 %v772, 4294901760
          %v1070 = vsub.f32 %v772, %v1069
          %1071 = vmatpush1.xpose.msra.mxu0 %v1070
          %1072 = vmatprep.subr.mxu0 0.0
          %v1073 = vand.u32 %v775, 4294901760
          %v1074 = vsub.f32 %v775, %v1073
          %1075 = vmatpush1.xpose.msra.mxu0 %v1074
          %1076 = vmatprep.subr.mxu0 0.0
          %v1077 = vand.u32 %v778, 4294901760
          %v1078 = vsub.f32 %v778, %v1077
          %1079 = vmatpush1.xpose.msra.mxu0 %v1078
          %1080 = vmatprep.subr.mxu0 0.0
          %v1081 = vand.u32 %v781, 4294901760
          %v1082 = vsub.f32 %v781, %v1081
          %1083 = vmatpush1.xpose.msra.mxu0 %v1082
          %1084 = vmatprep.subr.mxu0 0.0
          %v1085 = vand.u32 %v784, 4294901760
          %v1086 = vsub.f32 %v784, %v1085
          %1087 = vmatpush1.xpose.msra.mxu0 %v1086
          %1088 = vmatprep.subr.mxu0 0.0
          %v1089 = vand.u32 %v787, 4294901760
          %v1090 = vsub.f32 %v787, %v1089
          %1091 = vmatpush1.xpose.msra.mxu0 %v1090
          %1092 = vmatprep.subr.mxu0 0.0
          %v1093 = vand.u32 %v790, 4294901760
          %v1094 = vsub.f32 %v790, %v1093
          %1095 = vmatpush1.xpose.msra.mxu0 %v1094
          %1096 = vmatprep.subr.mxu0 0.0
          %v1097 = vand.u32 %v793, 4294901760
          %v1098 = vsub.f32 %v793, %v1097
          %1099 = vmatpush1.xpose.msra.mxu0 %v1098
          %1100 = vmatprep.subr.mxu0 0.0
          %v1101 = vand.u32 %v796, 4294901760
          %v1102 = vsub.f32 %v796, %v1101
          %1103 = vmatpush1.xpose.msra.mxu0 %v1102
          %1104 = vmatprep.subr.mxu0 0.0
          %1105 = vmatpush1.xpose.msra.mxu0 0.0
          %1106 = vmatprep.subr.mxu0 0.0
          %1107 = vmatpush1.xpose.msra.mxu0 0.0
          %1108 = vmatprep.subr.mxu0 0.0
          %1109 = vmatpush1.xpose.msra.mxu0 0.0
          %1110 = vmatprep.subr.mxu0 0.0
          %1111 = vmatpush1.xpose.msra.mxu0 0.0
          %1112 = vmatprep.subr.mxu0 0.0
          %1113 = vmatpush1.xpose.msra.mxu0 0.0
          %1114 = vmatprep.subr.mxu0 0.0
          %1115 = vmatpush1.xpose.msra.mxu0 0.0
          %1116 = vmatprep.subr.mxu0 0.0
          %1117 = vmatpush1.xpose.msra.mxu0 0.0
          %1118 = vmatprep.subr.mxu0 0.0
          %1119 = vmatpush1.xpose.msra.mxu0 0.0
          %1120 = vmatprep.subr.mxu0 0.0
          %1121 = vmatpush1.xpose.msra.mxu0 0.0
          %1122 = vmatprep.subr.mxu0 0.0
          %1123 = vmatpush1.xpose.msra.mxu0 0.0
          %1124 = vmatprep.subr.mxu0 0.0
          %1125 = vmatpush1.xpose.msra.mxu0 0.0
          %1126 = vmatprep.subr.mxu0 0.0
          %1127 = vmatpush1.xpose.msra.mxu0 0.0
          %1128 = vmatprep.subr.mxu0 0.0
          %1129 = vmatpush1.xpose.msra.mxu0 0.0
          %1130 = vmatprep.subr.mxu0 0.0
          %1131 = vmatpush1.xpose.msra.mxu0 0.0
          %1132 = vmatprep.subr.mxu0 0.0
          %1133 = vmatpush1.xpose.msra.mxu0 0.0
          %1134 = vmatprep.subr.mxu0 0.0
          %1135 = vmatpush1.xpose.msra.mxu0 0.0
          %1136 = vmatprep.mubr.f32.mxu0 0.0
          %v1137 = vand.u32 %v748, 4294901760
          %v1138 = vsub.f32 %v748, %v1137
          %1139 = vmatmul.mubr.f32.gmra.mrb[0].mxu0 %v1138
          %v1140 = vpop.f32.mrb[0].mxu0
          %v1141 = vadd.f32 %v1037, %v1140
          %v1142 = vpop.f32.mrb[0].mxu0
          %1143 = vdwg.mxu0
          %1144 = vmatprep.subr.mxu0 0.0
          %v1145 = vand.u32 %v751, 4294901760
          %1146 = vmatpush1.xpose.msra.mxu0 %v1145
          %1147 = vmatprep.subr.mxu0 0.0
          %v1148 = vand.u32 %v754, 4294901760
          %1149 = vmatpush1.xpose.msra.mxu0 %v1148
          %1150 = vmatprep.subr.mxu0 0.0
          %v1151 = vand.u32 %v757, 4294901760
          %1152 = vmatpush1.xpose.msra.mxu0 %v1151
          %1153 = vmatprep.subr.mxu0 0.0
          %v1154 = vand.u32 %v760, 4294901760
          %1155 = vmatpush1.xpose.msra.mxu0 %v1154
          %1156 = vmatprep.subr.mxu0 0.0
          %v1157 = vand.u32 %v763, 4294901760
          %1158 = vmatpush1.xpose.msra.mxu0 %v1157
          %1159 = vmatprep.subr.mxu0 0.0
          %v1160 = vand.u32 %v766, 4294901760
          %1161 = vmatpush1.xpose.msra.mxu0 %v1160
          %1162 = vmatprep.subr.mxu0 0.0
          %v1163 = vand.u32 %v769, 4294901760
          %1164 = vmatpush1.xpose.msra.mxu0 %v1163
          %1165 = vmatprep.subr.mxu0 0.0
          %v1166 = vand.u32 %v772, 4294901760
          %1167 = vmatpush1.xpose.msra.mxu0 %v1166
          %1168 = vmatprep.subr.mxu0 0.0
          %v1169 = vand.u32 %v775, 4294901760
          %1170 = vmatpush1.xpose.msra.mxu0 %v1169
          %1171 = vmatprep.subr.mxu0 0.0
          %v1172 = vand.u32 %v778, 4294901760
          %1173 = vmatpush1.xpose.msra.mxu0 %v1172
          %1174 = vmatprep.subr.mxu0 0.0
          %v1175 = vand.u32 %v781, 4294901760
          %1176 = vmatpush1.xpose.msra.mxu0 %v1175
          %1177 = vmatprep.subr.mxu0 0.0
          %v1178 = vand.u32 %v784, 4294901760
          %1179 = vmatpush1.xpose.msra.mxu0 %v1178
          %1180 = vmatprep.subr.mxu0 0.0
          %v1181 = vand.u32 %v787, 4294901760
          %1182 = vmatpush1.xpose.msra.mxu0 %v1181
          %1183 = vmatprep.subr.mxu0 0.0
          %v1184 = vand.u32 %v790, 4294901760
          %1185 = vmatpush1.xpose.msra.mxu0 %v1184
          %1186 = vmatprep.subr.mxu0 0.0
          %v1187 = vand.u32 %v793, 4294901760
          %1188 = vmatpush1.xpose.msra.mxu0 %v1187
          %1189 = vmatprep.subr.mxu0 0.0
          %v1190 = vand.u32 %v796, 4294901760
          %1191 = vmatpush1.xpose.msra.mxu0 %v1190
          %1192 = vmatprep.subr.mxu0 0.0
          %1193 = vmatpush1.xpose.msra.mxu0 0.0
          %1194 = vmatprep.subr.mxu0 0.0
          %1195 = vmatpush1.xpose.msra.mxu0 0.0
          %1196 = vmatprep.subr.mxu0 0.0
          %1197 = vmatpush1.xpose.msra.mxu0 0.0
          %1198 = vmatprep.subr.mxu0 0.0
          %1199 = vmatpush1.xpose.msra.mxu0 0.0
          %1200 = vmatprep.subr.mxu0 0.0
          %1201 = vmatpush1.xpose.msra.mxu0 0.0
          %1202 = vmatprep.subr.mxu0 0.0
          %1203 = vmatpush1.xpose.msra.mxu0 0.0
          %1204 = vmatprep.subr.mxu0 0.0
          %1205 = vmatpush1.xpose.msra.mxu0 0.0
          %1206 = vmatprep.subr.mxu0 0.0
          %1207 = vmatpush1.xpose.msra.mxu0 0.0
          %1208 = vmatprep.subr.mxu0 0.0
          %1209 = vmatpush1.xpose.msra.mxu0 0.0
          %1210 = vmatprep.subr.mxu0 0.0
          %1211 = vmatpush1.xpose.msra.mxu0 0.0
          %1212 = vmatprep.subr.mxu0 0.0
          %1213 = vmatpush1.xpose.msra.mxu0 0.0
          %1214 = vmatprep.subr.mxu0 0.0
          %1215 = vmatpush1.xpose.msra.mxu0 0.0
          %1216 = vmatprep.subr.mxu0 0.0
          %1217 = vmatpush1.xpose.msra.mxu0 0.0
          %1218 = vmatprep.subr.mxu0 0.0
          %1219 = vmatpush1.xpose.msra.mxu0 0.0
          %1220 = vmatprep.subr.mxu0 0.0
          %1221 = vmatpush1.xpose.msra.mxu0 0.0
          %1222 = vmatprep.subr.mxu0 0.0
          %1223 = vmatpush1.xpose.msra.mxu0 0.0
          %1224 = vmatprep.mubr.f32.mxu0 0.0
          %v1225 = vand.u32 %v748, 4294901760
          %v1226 = vsub.f32 %v748, %v1225
          %v1227 = vand.u32 %v1226, 4294901760
          %1228 = vmatmul.mubr.f32.gmra.mrb[0].mxu0 %v1227
          %v1229 = vpop.f32.mrb[0].mxu0
          %v1230 = vadd.f32 %v1141, %v1229
          %v1231 = vpop.f32.mrb[0].mxu0
          %1232 = vdwg.mxu0
          %1233 = vmatprep.subr.mxu0 0.0
          %v1234 = vand.u32 %v751, 4294901760
          %v1235 = vsub.f32 %v751, %v1234
          %v1236 = vand.u32 %v1235, 4294901760
          %1237 = vmatpush1.xpose.msra.mxu0 %v1236
          %1238 = vmatprep.subr.mxu0 0.0
          %v1239 = vand.u32 %v754, 4294901760
          %v1240 = vsub.f32 %v754, %v1239
          %v1241 = vand.u32 %v1240, 4294901760
          %1242 = vmatpush1.xpose.msra.mxu0 %v1241
          %1243 = vmatprep.subr.mxu0 0.0
          %v1244 = vand.u32 %v757, 4294901760
          %v1245 = vsub.f32 %v757, %v1244
          %v1246 = vand.u32 %v1245, 4294901760
          %1247 = vmatpush1.xpose.msra.mxu0 %v1246
          %1248 = vmatprep.subr.mxu0 0.0
          %v1249 = vand.u32 %v760, 4294901760
          %v1250 = vsub.f32 %v760, %v1249
          %v1251 = vand.u32 %v1250, 4294901760
          %1252 = vmatpush1.xpose.msra.mxu0 %v1251
          %1253 = vmatprep.subr.mxu0 0.0
          %v1254 = vand.u32 %v763, 4294901760
          %v1255 = vsub.f32 %v763, %v1254
          %v1256 = vand.u32 %v1255, 4294901760
          %1257 = vmatpush1.xpose.msra.mxu0 %v1256
          %1258 = vmatprep.subr.mxu0 0.0
          %v1259 = vand.u32 %v766, 4294901760
          %v1260 = vsub.f32 %v766, %v1259
          %v1261 = vand.u32 %v1260, 4294901760
          %1262 = vmatpush1.xpose.msra.mxu0 %v1261
          %1263 = vmatprep.subr.mxu0 0.0
          %v1264 = vand.u32 %v769, 4294901760
          %v1265 = vsub.f32 %v769, %v1264
          %v1266 = vand.u32 %v1265, 4294901760
          %1267 = vmatpush1.xpose.msra.mxu0 %v1266
          %1268 = vmatprep.subr.mxu0 0.0
          %v1269 = vand.u32 %v772, 4294901760
          %v1270 = vsub.f32 %v772, %v1269
          %v1271 = vand.u32 %v1270, 4294901760
          %1272 = vmatpush1.xpose.msra.mxu0 %v1271
          %1273 = vmatprep.subr.mxu0 0.0
          %v1274 = vand.u32 %v775, 4294901760
          %v1275 = vsub.f32 %v775, %v1274
          %v1276 = vand.u32 %v1275, 4294901760
          %1277 = vmatpush1.xpose.msra.mxu0 %v1276
          %1278 = vmatprep.subr.mxu0 0.0
          %v1279 = vand.u32 %v778, 4294901760
          %v1280 = vsub.f32 %v778, %v1279
          %v1281 = vand.u32 %v1280, 4294901760
          %1282 = vmatpush1.xpose.msra.mxu0 %v1281
          %1283 = vmatprep.subr.mxu0 0.0
          %v1284 = vand.u32 %v781, 4294901760
          %v1285 = vsub.f32 %v781, %v1284
          %v1286 = vand.u32 %v1285, 4294901760
          %1287 = vmatpush1.xpose.msra.mxu0 %v1286
          %1288 = vmatprep.subr.mxu0 0.0
          %v1289 = vand.u32 %v784, 4294901760
          %v1290 = vsub.f32 %v784, %v1289
          %v1291 = vand.u32 %v1290, 4294901760
          %1292 = vmatpush1.xpose.msra.mxu0 %v1291
          %1293 = vmatprep.subr.mxu0 0.0
          %v1294 = vand.u32 %v787, 4294901760
          %v1295 = vsub.f32 %v787, %v1294
          %v1296 = vand.u32 %v1295, 4294901760
          %1297 = vmatpush1.xpose.msra.mxu0 %v1296
          %1298 = vmatprep.subr.mxu0 0.0
          %v1299 = vand.u32 %v790, 4294901760
          %v1300 = vsub.f32 %v790, %v1299
          %v1301 = vand.u32 %v1300, 4294901760
          %1302 = vmatpush1.xpose.msra.mxu0 %v1301
          %1303 = vmatprep.subr.mxu0 0.0
          %v1304 = vand.u32 %v793, 4294901760
          %v1305 = vsub.f32 %v793, %v1304
          %v1306 = vand.u32 %v1305, 4294901760
          %1307 = vmatpush1.xpose.msra.mxu0 %v1306
          %1308 = vmatprep.subr.mxu0 0.0
          %v1309 = vand.u32 %v796, 4294901760
          %v1310 = vsub.f32 %v796, %v1309
          %v1311 = vand.u32 %v1310, 4294901760
          %1312 = vmatpush1.xpose.msra.mxu0 %v1311
          %1313 = vmatprep.subr.mxu0 0.0
          %1314 = vmatpush1.xpose.msra.mxu0 0.0
          %1315 = vmatprep.subr.mxu0 0.0
          %1316 = vmatpush1.xpose.msra.mxu0 0.0
          %1317 = vmatprep.subr.mxu0 0.0
          %1318 = vmatpush1.xpose.msra.mxu0 0.0
          %1319 = vmatprep.subr.mxu0 0.0
          %1320 = vmatpush1.xpose.msra.mxu0 0.0
          %1321 = vmatprep.subr.mxu0 0.0
          %1322 = vmatpush1.xpose.msra.mxu0 0.0
          %1323 = vmatprep.subr.mxu0 0.0
          %1324 = vmatpush1.xpose.msra.mxu0 0.0
          %1325 = vmatprep.subr.mxu0 0.0
          %1326 = vmatpush1.xpose.msra.mxu0 0.0
          %1327 = vmatprep.subr.mxu0 0.0
          %1328 = vmatpush1.xpose.msra.mxu0 0.0
          %1329 = vmatprep.subr.mxu0 0.0
          %1330 = vmatpush1.xpose.msra.mxu0 0.0
          %1331 = vmatprep.subr.mxu0 0.0
          %1332 = vmatpush1.xpose.msra.mxu0 0.0
          %1333 = vmatprep.subr.mxu0 0.0
          %1334 = vmatpush1.xpose.msra.mxu0 0.0
          %1335 = vmatprep.subr.mxu0 0.0
          %1336 = vmatpush1.xpose.msra.mxu0 0.0
          %1337 = vmatprep.subr.mxu0 0.0
          %1338 = vmatpush1.xpose.msra.mxu0 0.0
          %1339 = vmatprep.subr.mxu0 0.0
          %1340 = vmatpush1.xpose.msra.mxu0 0.0
          %1341 = vmatprep.subr.mxu0 0.0
          %1342 = vmatpush1.xpose.msra.mxu0 0.0
          %1343 = vmatprep.subr.mxu0 0.0
          %1344 = vmatpush1.xpose.msra.mxu0 0.0
          %1345 = vmatprep.mubr.f32.mxu0 0.0
          %v1346 = vand.u32 %v748, 4294901760
          %1347 = vmatmul.mubr.f32.gmra.mrb[0].mxu0 %v1346
          %v1348 = vpop.f32.mrb[0].mxu0
          %v1349 = vadd.f32 %v1230, %v1348
          %v1350 = vpop.f32.mrb[0].mxu0
          %1351 = vdwg.mxu0
          %1352 = vmatprep.subr.mxu0 0.0
          %v1353 = vand.u32 %v751, 4294901760
          %1354 = vmatpush1.xpose.msra.mxu0 %v1353
          %1355 = vmatprep.subr.mxu0 0.0
          %v1356 = vand.u32 %v754, 4294901760
          %1357 = vmatpush1.xpose.msra.mxu0 %v1356
          %1358 = vmatprep.subr.mxu0 0.0
          %v1359 = vand.u32 %v757, 4294901760
          %1360 = vmatpush1.xpose.msra.mxu0 %v1359
          %1361 = vmatprep.subr.mxu0 0.0
          %v1362 = vand.u32 %v760, 4294901760
          %1363 = vmatpush1.xpose.msra.mxu0 %v1362
          %1364 = vmatprep.subr.mxu0 0.0
          %v1365 = vand.u32 %v763, 4294901760
          %1366 = vmatpush1.xpose.msra.mxu0 %v1365
          %1367 = vmatprep.subr.mxu0 0.0
          %v1368 = vand.u32 %v766, 4294901760
          %1369 = vmatpush1.xpose.msra.mxu0 %v1368
          %1370 = vmatprep.subr.mxu0 0.0
          %v1371 = vand.u32 %v769, 4294901760
          %1372 = vmatpush1.xpose.msra.mxu0 %v1371
          %1373 = vmatprep.subr.mxu0 0.0
          %v1374 = vand.u32 %v772, 4294901760
          %1375 = vmatpush1.xpose.msra.mxu0 %v1374
          %1376 = vmatprep.subr.mxu0 0.0
          %v1377 = vand.u32 %v775, 4294901760
          %1378 = vmatpush1.xpose.msra.mxu0 %v1377
          %1379 = vmatprep.subr.mxu0 0.0
          %v1380 = vand.u32 %v778, 4294901760
          %1381 = vmatpush1.xpose.msra.mxu0 %v1380
          %1382 = vmatprep.subr.mxu0 0.0
          %v1383 = vand.u32 %v781, 4294901760
          %1384 = vmatpush1.xpose.msra.mxu0 %v1383
          %1385 = vmatprep.subr.mxu0 0.0
          %v1386 = vand.u32 %v784, 4294901760
          %1387 = vmatpush1.xpose.msra.mxu0 %v1386
          %1388 = vmatprep.subr.mxu0 0.0
          %v1389 = vand.u32 %v787, 4294901760
          %1390 = vmatpush1.xpose.msra.mxu0 %v1389
          %1391 = vmatprep.subr.mxu0 0.0
          %v1392 = vand.u32 %v790, 4294901760
          %1393 = vmatpush1.xpose.msra.mxu0 %v1392
          %1394 = vmatprep.subr.mxu0 0.0
          %v1395 = vand.u32 %v793, 4294901760
          %1396 = vmatpush1.xpose.msra.mxu0 %v1395
          %1397 = vmatprep.subr.mxu0 0.0
          %v1398 = vand.u32 %v796, 4294901760
          %1399 = vmatpush1.xpose.msra.mxu0 %v1398
          %1400 = vmatprep.subr.mxu0 0.0
          %1401 = vmatpush1.xpose.msra.mxu0 0.0
          %1402 = vmatprep.subr.mxu0 0.0
          %1403 = vmatpush1.xpose.msra.mxu0 0.0
          %1404 = vmatprep.subr.mxu0 0.0
          %1405 = vmatpush1.xpose.msra.mxu0 0.0
          %1406 = vmatprep.subr.mxu0 0.0
          %1407 = vmatpush1.xpose.msra.mxu0 0.0
          %1408 = vmatprep.subr.mxu0 0.0
          %1409 = vmatpush1.xpose.msra.mxu0 0.0
          %1410 = vmatprep.subr.mxu0 0.0
          %1411 = vmatpush1.xpose.msra.mxu0 0.0
          %1412 = vmatprep.subr.mxu0 0.0
          %1413 = vmatpush1.xpose.msra.mxu0 0.0
          %1414 = vmatprep.subr.mxu0 0.0
          %1415 = vmatpush1.xpose.msra.mxu0 0.0
          %1416 = vmatprep.subr.mxu0 0.0
          %1417 = vmatpush1.xpose.msra.mxu0 0.0
          %1418 = vmatprep.subr.mxu0 0.0
          %1419 = vmatpush1.xpose.msra.mxu0 0.0
          %1420 = vmatprep.subr.mxu0 0.0
          %1421 = vmatpush1.xpose.msra.mxu0 0.0
          %1422 = vmatprep.subr.mxu0 0.0
          %1423 = vmatpush1.xpose.msra.mxu0 0.0
          %1424 = vmatprep.subr.mxu0 0.0
          %1425 = vmatpush1.xpose.msra.mxu0 0.0
          %1426 = vmatprep.subr.mxu0 0.0
          %1427 = vmatpush1.xpose.msra.mxu0 0.0
          %1428 = vmatprep.subr.mxu0 0.0
          %1429 = vmatpush1.xpose.msra.mxu0 0.0
          %1430 = vmatprep.subr.mxu0 0.0
          %1431 = vmatpush1.xpose.msra.mxu0 0.0
          %1432 = vmatprep.mubr.f32.mxu0 0.0
          %v1433 = vand.u32 %v748, 4294901760
          %1434 = vmatmul.mubr.f32.gmra.mrb[0].mxu0 %v1433
          %v1435 = vpop.f32.mrb[0].mxu0
          %v1436 = vadd.f32 %v1349, %v1435
          %v1437 = vpop.f32.mrb[0].mxu0
          %1438 = vdwg.mxu0
          %1439 = vst [vmem:[%s226] sm:$0x1] %v1436
        $region44: #{tpu_custom_call.1} parent=35 // pred_fallthru
          _
        %s1440 = sand.u32 %s136, 1
        %s1441 = scalar_lea.sflag [#allocation5], %s1440
        %s1442 = sand.u32 %s136, 1
        %s1443 = scalar_lea.vmem [#allocation4], %s1442
        // Predicated region
        $region45: #{tpu_custom_call.1} parent=35 // pred_check
          %p1444 = pneg %p146
        $region46: #{tpu_custom_call.1} parent=35 // pred_check_branch
          %1446 = sbr.rel (%p1444) target = $region48
        $region47: #{tpu_custom_call.1} parent=35 // pred_region
          %s1448 = ssub.s32 16, 16
          %1449 = vsyncadd %s1441, %s1448
          %s1450 = smul.addr %s22, 16
          %s1451 = scalar_lea.hbm %s4, %s1450
          %s1453 = sshll.u32 %s1443, 4
          %s1454 = int_to_ptr.vmem [resolvable:$true] %s1453
          %1456 = dma.vmem_to_hbm [thread:$0]  %s1454, 16, %s1451, %s1441
        $region48: #{tpu_custom_call.1} parent=35 // pred_fallthru
          _
      $region36: #{tpu_custom_call.1} parent=5 // pred_fallthru
        _
      %p1457 = scmp.le.s32.totalorder 2, %s13
      // Predicated region
      $region49: #{tpu_custom_call.1} parent=5 // pred_check
        %p1458 = pneg %p1457
      $region50: #{tpu_custom_call.1} parent=5 // pred_check_branch
        %1460 = sbr.rel (%p1458) target = $region52
      $region51: #{tpu_custom_call.1} parent=5 // pred_region
        %s1461 = ssub.s32 %s13, 2
        // Predicated region
        $region53: #{tpu_custom_call.1} parent=51 // pred_check
          %p1462 = pneg %p152
        $region54: #{tpu_custom_call.1} parent=51 // pred_check_branch
          %1464 = sbr.rel (%p1462) target = $region56
        $region55: #{tpu_custom_call.1} parent=51 // pred_region
          %s1465 = sand.u32 %s137, 1
          %s1466 = scalar_lea.sflag [#allocation5], %s1465
          %s1467 = sand.u32 %s137, 1
          %s1468 = scalar_lea.vmem [#allocation4], %s1467
          %1469 = dma.done %s1466, 16
        $region56: #{tpu_custom_call.1} parent=51 // pred_fallthru
          _
      $region52: #{tpu_custom_call.1} parent=5 // pred_fallthru
        _
    $region6: #{tpu_custom_call.1} parent=1 // loop_footer
      %s17 = sadd.s32 1, %s13
    $region7: #{tpu_custom_call.1} parent=1 // loop_footer_branch
      %12 = sbr.rel target = $region3
    $region8: #{tpu_custom_call.1} parent=1 // loop_exit
      _
    %1470 = vsyncpa [#allocation5], 1
    %s1471 = scalar_lea.sflag [#allocation5], 1
    %1472 = vsyncpa %s1471, 1

</llo_original>
